<compile_context>
chip_gen: v6e
topology: v6e:2x2x1
jax: 0.10.0
libtpu: 0.0.40
codegen_flags: <defaults>
</compile_context>

<pallas_src>
import jax
import jax.numpy as jnp
import numpy as np
from jax.experimental import pallas as pl
from jax.experimental.pallas import tpu as pltpu


def _gat_kernel(xf_ref, zf_ref,
                wxp_ref, bxp_ref,
                wzp_ref, bzp_ref,
                wfi_e_ref, wfi_x_ref, bfi_ref,
                out_ref):
    f32 = jnp.float32
    C = wxp_ref.shape[0]

    xf = xf_ref[0]                        # [Nx, C]
    zf = zf_ref[0]                        # [Nz, C]

    # Fused 1x1-conv projections: [query | g] for xf, [support | g] for zf.
    # Eval-mode BatchNorm of the g branch is already folded into the weights.
    xp = jnp.dot(xf, wxp_ref[...], preferred_element_type=f32) + bxp_ref[...]
    zp = jnp.dot(zf, wzp_ref[...], preferred_element_type=f32) + bzp_ref[...]

    xf_q = xp[:, :C]                      # query(xf)
    xf_g = jnp.maximum(xp[:, C:], 0.0)    # relu(bn(g(xf)))
    zf_s = zp[:, :C]                      # support(zf)
    zf_g = jnp.maximum(zp[:, C:], 0.0)    # relu(bn(g(zf)))

    # similarity: [Nx, C] x [Nz, C] contracted over C -> [Nx, Nz]
    sim = jax.lax.dot_general(xf_q, zf_s, (((1,), (1,)), ((), ())),
                              preferred_element_type=f32)

    # softmax over the zf-token axis, with deferred normalization
    m = jnp.max(sim, axis=-1, keepdims=True)
    p = jnp.exp(sim - m)
    l = jnp.sum(p, axis=-1, keepdims=True)           # [Nx, 1]

    # embedding: [Nx, Nz] @ [Nz, C] -> [Nx, C], then normalize once
    emb = jnp.dot(p, zf_g, preferred_element_type=f32)
    emb = emb * pl.reciprocal(l, approx=False)

    # fi on concat([embedding, xf_g], channel) == split-weight matmuls,
    # BatchNorm already folded into wfi_e / wfi_x / bfi.
    out = (jnp.dot(emb, wfi_e_ref[...], preferred_element_type=f32)
           + jnp.dot(xf_g, wfi_x_ref[...], preferred_element_type=f32)
           + bfi_ref[...])
    out = jnp.maximum(out, 0.0)                       # [Nx, Cout]

    # Lane-dense write: block is [Cout, Nx] so the lane dim (Nx) is a full
    # multiple of 128 -> unmasked stores instead of 32/128 masked stores.
    out_ref[0] = out.T.astype(out_ref.dtype)


def graph_attention_union(zf, xf, params):
    """zf: [B, C, Hz, Wz], xf: [B, C, Hx, Wx] (NCHW). Returns [B, Cout, Hx, Wx]."""
    B, C, Hz, Wz = zf.shape
    _, _, Hx, Wx = xf.shape
    Nz, Nx = Hz * Wz, Hx * Wx
    Cout = params["w_fi"].shape[0]

    # NCHW -> token-major [B, N, C]
    xf_tok = jnp.transpose(xf, (0, 2, 3, 1)).reshape(B, Nx, C)
    zf_tok = jnp.transpose(zf, (0, 2, 3, 1)).reshape(B, Nz, C)

    eps = 1e-5
    g_scale = params["g_gamma"] / jnp.sqrt(params["g_var"] + eps)
    g_shift = params["g_beta"] - params["g_mean"] * g_scale
    fi_scale = params["fi_gamma"] / jnp.sqrt(params["fi_var"] + eps)
    fi_shift = params["fi_beta"] - params["fi_mean"] * fi_scale

    # 1x1 conv weights as [Cin, Cout]; fold eval-mode BN into g / fi weights.
    wqT = params["w_q"].T
    wsT = params["w_s"].T
    wgT = params["w_g"].T * g_scale[None, :]
    bg = params["b_g"] * g_scale + g_shift

    wfiT = params["w_fi"].T * fi_scale[None, :]        # [2C, Cout]
    bfi = params["b_fi"] * fi_scale + fi_shift
    wfi_e = wfiT[:C]                                   # half applied to embedding
    wfi_x = wfiT[C:]                                   # half applied to xf_g

    # Fused projection weights: one [C, 2C] matmul per input instead of two
    # [C, C] matmuls -> wider MXU output tiles, half the push/pop sequences.
    w_xproj = jnp.concatenate([wqT, wgT], axis=1)      # [C, 2C]
    b_xproj = jnp.concatenate([params["b_q"], bg])     # [2C]
    w_zproj = jnp.concatenate([wsT, wgT], axis=1)      # [C, 2C]
    b_zproj = jnp.concatenate([params["b_s"], bg])     # [2C]

    row = lambda v: v.reshape(1, -1)

    def full_spec(shape):
        return pl.BlockSpec(shape, lambda b, _n=len(shape): (0,) * _n)

    in_specs = [
        pl.BlockSpec((1, Nx, C), lambda b: (b, 0, 0)),
        pl.BlockSpec((1, Nz, C), lambda b: (b, 0, 0)),
        full_spec((C, 2 * C)), full_spec((1, 2 * C)),        # xf fused proj
        full_spec((C, 2 * C)), full_spec((1, 2 * C)),        # zf fused proj
        full_spec((C, Cout)), full_spec((C, Cout)),          # fi split weights
        full_spec((1, Cout)),                                # fi bias
    ]

    out_t = pl.pallas_call(
        _gat_kernel,
        out_shape=jax.ShapeDtypeStruct((B, Cout, Nx), xf.dtype),
        grid=(B,),
        in_specs=in_specs,
        out_specs=pl.BlockSpec((1, Cout, Nx), lambda b: (b, 0, 0)),
        compiler_params=pltpu.CompilerParams(
            dimension_semantics=("parallel",)),
    )(xf_tok, zf_tok,
      w_xproj, row(b_xproj), w_zproj, row(b_zproj),
      wfi_e, wfi_x, row(bfi))

    # [B, Cout, Nx] is already channel-major; reshape straight to NCHW.
    return out_t.reshape(B, Cout, Hx, Wx)


def reference_forward(zf, xf, params):
    """Pure-JAX reference matching the PyTorch forward (BN in eval mode)."""
    eps = 1e-5

    def conv1x1(x, w, b):                      # x: NCHW, w: [Cout, Cin]
        return jnp.einsum("bchw,oc->bohw", x, w) + b[None, :, None, None]

    def bn(x, gamma, beta, mean, var):
        inv = gamma / jnp.sqrt(var + eps)
        return (x - mean[None, :, None, None]) * inv[None, :, None, None] \
               + beta[None, :, None, None]

    xf_trans = conv1x1(xf, params["w_q"], params["b_q"])
    zf_trans = conv1x1(zf, params["w_s"], params["b_s"])

    def g_branch(t):
        t = conv1x1(t, params["w_g"], params["b_g"])
        t = bn(t, params["g_gamma"], params["g_beta"],
               params["g_mean"], params["g_var"])
        return jnp.maximum(t, 0.0)

    xf_g = g_branch(xf)
    zf_g = g_branch(zf)

    B, C, Hx, Wx = xf_trans.shape
    _, _, Hz, Wz = zf_trans.shape
    zf_trans_plain = zf_trans.reshape(B, C, Hz * Wz)
    zf_g_plain = zf_g.reshape(B, C, Hz * Wz).transpose(0, 2, 1)
    xf_trans_plain = xf_trans.reshape(B, C, Hx * Wx).transpose(0, 2, 1)

    similar = jnp.einsum("bnc,bcm->bnm", xf_trans_plain, zf_trans_plain)
    similar = jax.nn.softmax(similar, axis=2)
    embedding = jnp.einsum("bnm,bmc->bnc", similar, zf_g_plain).transpose(0, 2, 1)
    embedding = embedding.reshape(B, C, Hx, Wx)

    cat = jnp.concatenate([embedding, xf_g], axis=1)
    out = conv1x1(cat, params["w_fi"], params["b_fi"])
    out = bn(out, params["fi_gamma"], params["fi_beta"],
             params["fi_mean"], params["fi_var"])
    return jnp.maximum(out, 0.0)


def make_params(key, in_channel, out_channel):
    ks = jax.random.split(key, 12)
    n = lambda k, shape, s=0.1: (s * jax.random.normal(k, shape)).astype(jnp.float32)
    return {
        "w_q": n(ks[0], (in_channel, in_channel)),
        "b_q": n(ks[1], (in_channel,)),
        "w_s": n(ks[2], (in_channel, in_channel)),
        "b_s": n(ks[3], (in_channel,)),
        "w_g": n(ks[4], (in_channel, in_channel)),
        "b_g": n(ks[5], (in_channel,)),
        "g_gamma": 1.0 + n(ks[6], (in_channel,)),
        "g_beta": n(ks[7], (in_channel,)),
        "g_mean": n(ks[8], (in_channel,)),
        "g_var": jnp.abs(1.0 + n(ks[9], (in_channel,))).astype(jnp.float32),
        "w_fi": n(ks[10], (out_channel, 2 * in_channel)),
        "b_fi": n(ks[11], (out_channel,)),
        "fi_gamma": jnp.ones((out_channel,), jnp.float32),
        "fi_beta": jnp.zeros((out_channel,), jnp.float32),
        "fi_mean": jnp.zeros((out_channel,), jnp.float32),
        "fi_var": jnp.ones((out_channel,), jnp.float32),
    }


if __name__ == "__main__":
    B, C, Cout = 2, 32, 32
    Hz = Wz = 8           # template feature map (zf)
    Hx = Wx = 16          # search feature map (xf)

    key = jax.random.PRNGKey(0)
    k_zf, k_xf, k_p = jax.random.split(key, 3)
    zf = jax.random.normal(k_zf, (B, C, Hz, Wz), dtype=jnp.float32)
    xf = jax.random.normal(k_xf, (B, C, Hx, Wx), dtype=jnp.float32)
    params = make_params(k_p, C, Cout)

    out = graph_attention_union(zf, xf, params)
    out = jax.block_until_ready(out)

    ref = jax.block_until_ready(reference_forward(zf, xf, params))
    assert out.shape == (B, Cout, Hx, Wx), out.shape
    np.testing.assert_allclose(np.asarray(out), np.asarray(ref),
                               rtol=1e-4, atol=1e-4)
    print("KERNEL_OK")
</pallas_src>

<mosaic_0001>
module attributes {stable_mosaic.version = 11 : i64} {
  func.func @_gat_kernel(%arg0: i32, %arg1: memref<1x256x32xf32, #tpu.memory_space<vmem>>, %arg2: memref<1x64x32xf32, #tpu.memory_space<vmem>>, %arg3: memref<32x64xf32, #tpu.memory_space<vmem>>, %arg4: memref<1x64xf32, #tpu.memory_space<vmem>>, %arg5: memref<32x64xf32, #tpu.memory_space<vmem>>, %arg6: memref<1x64xf32, #tpu.memory_space<vmem>>, %arg7: memref<32x32xf32, #tpu.memory_space<vmem>>, %arg8: memref<32x32xf32, #tpu.memory_space<vmem>>, %arg9: memref<1x32xf32, #tpu.memory_space<vmem>>, %arg10: memref<1x32x256xf32, #tpu.memory_space<vmem>>) attributes {dimension_semantics = [#tpu.dimension_semantics<parallel>], iteration_bounds = array<i64: 2>, scalar_prefetch = 0 : i64, scratch_operands = 0 : i64, tpu.core_type = #tpu.core_type<tc>, window_params = [{transform_indices = @transform_0, window_bounds = array<i64: 1, 256, 32>}, {transform_indices = @transform_1, window_bounds = array<i64: 1, 64, 32>}, {pipeline_mode = #tpu.pipeline_mode<synchronous>, transform_indices = @transform_2, window_bounds = array<i64: 32, 64>}, {pipeline_mode = #tpu.pipeline_mode<synchronous>, transform_indices = @transform_3, window_bounds = array<i64: 1, 64>}, {pipeline_mode = #tpu.pipeline_mode<synchronous>, transform_indices = @transform_4, window_bounds = array<i64: 32, 64>}, {pipeline_mode = #tpu.pipeline_mode<synchronous>, transform_indices = @transform_5, window_bounds = array<i64: 1, 64>}, {pipeline_mode = #tpu.pipeline_mode<synchronous>, transform_indices = @transform_6, window_bounds = array<i64: 32, 32>}, {pipeline_mode = #tpu.pipeline_mode<synchronous>, transform_indices = @transform_7, window_bounds = array<i64: 32, 32>}, {pipeline_mode = #tpu.pipeline_mode<synchronous>, transform_indices = @transform_8, window_bounds = array<i64: 1, 32>}, {transform_indices = @transform_9, window_bounds = array<i64: 1, 32, 256>}]} {
    %c0 = arith.constant 0 : index
    %c0_0 = arith.constant 0 : index
    %c0_1 = arith.constant 0 : index
    %0 = vector.load %arg1[%c0, %c0_0, %c0_1] : memref<1x256x32xf32, #tpu.memory_space<vmem>>, vector<1x256x32xf32>
    %1 = vector.shape_cast %0 : vector<1x256x32xf32> to vector<256x32xf32>
    %c0_2 = arith.constant 0 : index
    %c0_3 = arith.constant 0 : index
    %c0_4 = arith.constant 0 : index
    %2 = vector.load %arg2[%c0_2, %c0_3, %c0_4] : memref<1x64x32xf32, #tpu.memory_space<vmem>>, vector<1x64x32xf32>
    %3 = vector.shape_cast %2 : vector<1x64x32xf32> to vector<64x32xf32>
    %c0_5 = arith.constant 0 : index
    %c0_6 = arith.constant 0 : index
    %4 = vector.load %arg3[%c0_5, %c0_6] : memref<32x64xf32, #tpu.memory_space<vmem>>, vector<32x64xf32>
    %cst = arith.constant dense<0.000000e+00> : vector<256x64xf32>
    %5 = tpu.matmul %1, %4, %cst {dimension_numbers = #tpu.dot_dimension_numbers<[1], [0], [0], [1], [0, 0, 1, 1], [], []>} : vector<256x32xf32>, vector<32x64xf32>, vector<256x64xf32> -> vector<256x64xf32>
    %c0_7 = arith.constant 0 : index
    %c0_8 = arith.constant 0 : index
    %6 = vector.load %arg4[%c0_7, %c0_8] : memref<1x64xf32, #tpu.memory_space<vmem>>, vector<1x64xf32>
    %7 = vector.broadcast %6 : vector<1x64xf32> to vector<256x64xf32>
    %8 = arith.addf %5, %7 : vector<256x64xf32>
    %c0_9 = arith.constant 0 : index
    %c0_10 = arith.constant 0 : index
    %9 = vector.load %arg5[%c0_9, %c0_10] : memref<32x64xf32, #tpu.memory_space<vmem>>, vector<32x64xf32>
    %cst_11 = arith.constant dense<0.000000e+00> : vector<64x64xf32>
    %10 = tpu.matmul %3, %9, %cst_11 {dimension_numbers = #tpu.dot_dimension_numbers<[1], [0], [0], [1], [0, 0, 1, 1], [], []>} : vector<64x32xf32>, vector<32x64xf32>, vector<64x64xf32> -> vector<64x64xf32>
    %c0_12 = arith.constant 0 : index
    %c0_13 = arith.constant 0 : index
    %11 = vector.load %arg6[%c0_12, %c0_13] : memref<1x64xf32, #tpu.memory_space<vmem>>, vector<1x64xf32>
    %12 = vector.broadcast %11 : vector<1x64xf32> to vector<64x64xf32>
    %13 = arith.addf %10, %12 : vector<64x64xf32>
    %14 = vector.extract_strided_slice %8 {offsets = [0, 0], sizes = [256, 32], strides = [1, 1]} : vector<256x64xf32> to vector<256x32xf32>
    %15 = vector.extract_strided_slice %8 {offsets = [0, 32], sizes = [256, 32], strides = [1, 1]} : vector<256x64xf32> to vector<256x32xf32>
    %cst_14 = arith.constant 0.000000e+00 : f32
    %16 = vector.broadcast %cst_14 : f32 to vector<256x32xf32>
    %17 = arith.maximumf %15, %16 : vector<256x32xf32>
    %18 = vector.extract_strided_slice %13 {offsets = [0, 0], sizes = [64, 32], strides = [1, 1]} : vector<64x64xf32> to vector<64x32xf32>
    %19 = vector.extract_strided_slice %13 {offsets = [0, 32], sizes = [64, 32], strides = [1, 1]} : vector<64x64xf32> to vector<64x32xf32>
    %cst_15 = arith.constant 0.000000e+00 : f32
    %20 = vector.broadcast %cst_15 : f32 to vector<64x32xf32>
    %21 = arith.maximumf %19, %20 : vector<64x32xf32>
    %cst_16 = arith.constant dense<0.000000e+00> : vector<256x64xf32>
    %22 = tpu.matmul %14, %18, %cst_16 {dimension_numbers = #tpu.dot_dimension_numbers<[1], [1], [0], [0], [0, 0, 1, 0], [], []>} : vector<256x32xf32>, vector<64x32xf32>, vector<256x64xf32> -> vector<256x64xf32>
    %cst_17 = arith.constant dense<0xFF800000> : vector<256xf32>
    %23 = vector.multi_reduction <maximumf>, %22, %cst_17 [1] : vector<256x64xf32> to vector<256xf32>
    %24 = vector.shape_cast %23 : vector<256xf32> to vector<256x1xf32>
    %25 = vector.broadcast %24 : vector<256x1xf32> to vector<256x64xf32>
    %26 = arith.subf %22, %25 : vector<256x64xf32>
    %27 = math.exp %26 : vector<256x64xf32>
    %cst_18 = arith.constant dense<0.000000e+00> : vector<256xf32>
    %28 = vector.multi_reduction <add>, %27, %cst_18 [1] : vector<256x64xf32> to vector<256xf32>
    %29 = vector.shape_cast %28 : vector<256xf32> to vector<256x1xf32>
    %cst_19 = arith.constant dense<0.000000e+00> : vector<256x32xf32>
    %30 = tpu.matmul %27, %21, %cst_19 {dimension_numbers = #tpu.dot_dimension_numbers<[1], [0], [0], [1], [0, 0, 1, 1], [], []>} : vector<256x64xf32>, vector<64x32xf32>, vector<256x32xf32> -> vector<256x32xf32>
    %31 = tpu.reciprocal %29 : vector<256x1xf32> -> vector<256x1xf32>
    %32 = vector.broadcast %31 : vector<256x1xf32> to vector<256x32xf32>
    %33 = arith.mulf %30, %32 : vector<256x32xf32>
    %c0_20 = arith.constant 0 : index
    %c0_21 = arith.constant 0 : index
    %34 = vector.load %arg7[%c0_20, %c0_21] : memref<32x32xf32, #tpu.memory_space<vmem>>, vector<32x32xf32>
    %cst_22 = arith.constant dense<0.000000e+00> : vector<256x32xf32>
    %35 = tpu.matmul %33, %34, %cst_22 {dimension_numbers = #tpu.dot_dimension_numbers<[1], [0], [0], [1], [0, 0, 1, 1], [], []>} : vector<256x32xf32>, vector<32x32xf32>, vector<256x32xf32> -> vector<256x32xf32>
    %c0_23 = arith.constant 0 : index
    %c0_24 = arith.constant 0 : index
    %36 = vector.load %arg8[%c0_23, %c0_24] : memref<32x32xf32, #tpu.memory_space<vmem>>, vector<32x32xf32>
    %cst_25 = arith.constant dense<0.000000e+00> : vector<256x32xf32>
    %37 = tpu.matmul %17, %36, %cst_25 {dimension_numbers = #tpu.dot_dimension_numbers<[1], [0], [0], [1], [0, 0, 1, 1], [], []>} : vector<256x32xf32>, vector<32x32xf32>, vector<256x32xf32> -> vector<256x32xf32>
    %38 = arith.addf %35, %37 : vector<256x32xf32>
    %c0_26 = arith.constant 0 : index
    %c0_27 = arith.constant 0 : index
    %39 = vector.load %arg9[%c0_26, %c0_27] : memref<1x32xf32, #tpu.memory_space<vmem>>, vector<1x32xf32>
    %40 = vector.broadcast %39 : vector<1x32xf32> to vector<256x32xf32>
    %41 = arith.addf %38, %40 : vector<256x32xf32>
    %cst_28 = arith.constant 0.000000e+00 : f32
    %42 = vector.broadcast %cst_28 : f32 to vector<256x32xf32>
    %43 = arith.maximumf %41, %42 : vector<256x32xf32>
    %44 = tpu.transpose %43, [1, 0] : vector<256x32xf32> -> vector<32x256xf32>
    %c0_29 = arith.constant 0 : index
    %c0_30 = arith.constant 0 : index
    %c0_31 = arith.constant 0 : index
    %45 = vector.load %arg10[%c0_29, %c0_30, %c0_31] : memref<1x32x256xf32, #tpu.memory_space<vmem>>, vector<1x32x256xf32>
    %46 = vector.shape_cast %45 : vector<1x32x256xf32> to vector<32x256xf32>
    %47 = vector.shape_cast %44 : vector<32x256xf32> to vector<1x32x256xf32>
    tpu.vector_store %arg10[%c0_29, %c0_30, %c0_31], %47 {strides = array<i32>} : memref<1x32x256xf32, #tpu.memory_space<vmem>>, vector<1x32x256xf32>,
    return
  }
  func.func @transform_0(%arg0: i32) -> (i32, i32, i32) {
    %c0_i32 = arith.constant 0 : i32
    %c0_i32_0 = arith.constant 0 : i32
    %c0_i32_1 = arith.constant 0 : i32
    return %arg0, %c0_i32, %c0_i32_0 : i32, i32, i32
  }
  func.func @transform_1(%arg0: i32) -> (i32, i32, i32) {
    %c0_i32 = arith.constant 0 : i32
    %c0_i32_0 = arith.constant 0 : i32
    %c0_i32_1 = arith.constant 0 : i32
    return %arg0, %c0_i32, %c0_i32_0 : i32, i32, i32
  }
  func.func @transform_2(%arg0: i32) -> (i32, i32) {
    %c0_i32 = arith.constant 0 : i32
    %c0_i32_0 = arith.constant 0 : i32
    %c0_i32_1 = arith.constant 0 : i32
    return %c0_i32, %c0_i32_0 : i32, i32
  }
  func.func @transform_3(%arg0: i32) -> (i32, i32) {
    %c0_i32 = arith.constant 0 : i32
    %c0_i32_0 = arith.constant 0 : i32
    %c0_i32_1 = arith.constant 0 : i32
    return %c0_i32, %c0_i32_0 : i32, i32
  }
  func.func @transform_4(%arg0: i32) -> (i32, i32) {
    %c0_i32 = arith.constant 0 : i32
    %c0_i32_0 = arith.constant 0 : i32
    %c0_i32_1 = arith.constant 0 : i32
    return %c0_i32, %c0_i32_0 : i32, i32
  }
  func.func @transform_5(%arg0: i32) -> (i32, i32) {
    %c0_i32 = arith.constant 0 : i32
    %c0_i32_0 = arith.constant 0 : i32
    %c0_i32_1 = arith.constant 0 : i32
    return %c0_i32, %c0_i32_0 : i32, i32
  }
  func.func @transform_6(%arg0: i32) -> (i32, i32) {
    %c0_i32 = arith.constant 0 : i32
    %c0_i32_0 = arith.constant 0 : i32
    %c0_i32_1 = arith.constant 0 : i32
    return %c0_i32, %c0_i32_0 : i32, i32
  }
  func.func @transform_7(%arg0: i32) -> (i32, i32) {
    %c0_i32 = arith.constant 0 : i32
    %c0_i32_0 = arith.constant 0 : i32
    %c0_i32_1 = arith.constant 0 : i32
    return %c0_i32, %c0_i32_0 : i32, i32
  }
  func.func @transform_8(%arg0: i32) -> (i32, i32) {
    %c0_i32 = arith.constant 0 : i32
    %c0_i32_0 = arith.constant 0 : i32
    %c0_i32_1 = arith.constant 0 : i32
    return %c0_i32, %c0_i32_0 : i32, i32
  }
  func.func @transform_9(%arg0: i32) -> (i32, i32, i32) {
    %c0_i32 = arith.constant 0 : i32
    %c0_i32_0 = arith.constant 0 : i32
    %c0_i32_1 = arith.constant 0 : i32
    return %arg0, %c0_i32, %c0_i32_0 : i32, i32, i32
  }
}

</mosaic_0001>

<llo_original>
// kernel: tpu_custom_call.1
$region0: #{tpu_custom_call.1}
  #allocation0 [shape = 'u32[]', space=smem, size = 0x4, offset = 0x4, fixed_abs, tag = 'smem constant byte address 0x4 - core index']
  #allocation1 [shape = 'u32[144,128]{1,0:T(1,128)}', space=vmem, size = 0x12000, scoped, tag = 'internal scratch']
  %s0 = inlined_call_operand.vmem [shape: f32[2,256,32], index: 0, kind: input, shape index: {}]
  %s1 = inlined_call_operand.vmem [shape: f32[2,64,32], index: 1, kind: input, shape index: {}]
  %s2 = inlined_call_operand.vmem [shape: f32[32,64], index: 2, kind: input, shape index: {}]
  %s3 = inlined_call_operand.vmem [shape: f32[1,64], index: 3, kind: input, shape index: {}]
  %s4 = inlined_call_operand.vmem [shape: f32[32,64], index: 4, kind: input, shape index: {}]
  %s5 = inlined_call_operand.vmem [shape: f32[1,64], index: 5, kind: input, shape index: {}]
  %s6 = inlined_call_operand.vmem [shape: f32[32,32], index: 6, kind: input, shape index: {}]
  %s7 = inlined_call_operand.vmem [shape: f32[32,32], index: 7, kind: input, shape index: {}]
  %s8 = inlined_call_operand.vmem [shape: f32[1,32], index: 8, kind: input, shape index: {}]
  %s9 = inlined_call_operand.hbm [shape: f32[2,32,256], index: 9, kind: output, shape index: {}]
  %s10 = sld [smem:[#allocation0]]
  $region69: #{tpu_custom_call.1} parent=0
    _
  %s12 = ssub.s32 1, %s10
  %s13 = scalar_select 0, %s12, %s10
  $region1: #{tpu_custom_call.1} parent=0
    #allocation2 [shape = 'u8[65536]{0}', space=vmem, size = 0x10000, scoped, tag = 'output window, operand 0']
    #allocation3 [shape = 's32[2]{0}', space=sflag, size = 0x8, scoped, tag = 'scoped memory for tpu_custom_call.1']
    %14 = vsyncpa [#allocation3], 0
    %s15 = scalar_lea.sflag [#allocation3], 1
    %16 = vsyncpa %s15, 0
    loop: start=0, step=1, limit=4
    $region2: #{tpu_custom_call.1} parent=1 // loop_pre_header
      _
    $region3: #{tpu_custom_call.1} parent=1 // loop_header
      %s18 = sphi 0, %s22
      %p19 = scmp.ge.s32.totalorder %s18, 4
      %s28 = sphi 0, %s30
      %s31 = sphi 0, %s28
      %s32 = sphi 0, %s31
      %s48 = sphi 0, %s32
      %s54 = sphi 0, %s56
      %s57 = sphi 0, %s54
      %s58 = sphi 0, %s57
      %s74 = sphi 0, %s58
      %s78 = sphi 0, %s78
      %s80 = sphi 0, %s78
      %s81 = sphi 0, %s80
      %s95 = sphi 0, %s81
      %s99 = sphi 0, %s99
      %s101 = sphi 0, %s99
      %s102 = sphi 0, %s101
      %s116 = sphi 0, %s102
      %s120 = sphi 0, %s120
      %s122 = sphi 0, %s120
      %s123 = sphi 0, %s122
      %s137 = sphi 0, %s123
      %s141 = sphi 0, %s141
      %s143 = sphi 0, %s141
      %s144 = sphi 0, %s143
      %s158 = sphi 0, %s144
      %s162 = sphi 0, %s162
      %s164 = sphi 0, %s162
      %s165 = sphi 0, %s164
      %s179 = sphi 0, %s165
      %s183 = sphi 0, %s183
      %s185 = sphi 0, %s183
      %s186 = sphi 0, %s185
      %s200 = sphi 0, %s186
      %s204 = sphi 0, %s204
      %s206 = sphi 0, %s204
      %s207 = sphi 0, %s206
      %s221 = sphi 0, %s207
      %s227 = sphi 0, %s229
      %s230 = sphi 0, %s227
      %s231 = sphi 0, %s230
      %s247 = sphi 0, %s231
    $region4: #{tpu_custom_call.1} parent=1 // loop_header_branch
      %21 = sbr.rel (%p19) target = $region8
    $region5: #{tpu_custom_call.1} parent=1 // loop_body
      %s23 = ssub.s32 %s18, 1
      %s24 = ssub.s32 %s18, 2
      %s25 = sadd.s32 %s18, 1
      %s26 = ssub.s32 %s18, %s25
      %p27 = scmp.eq.s32.totalorder %s26, 0
      %s29 = sadd.s32 %s28, 1
      %s30 = scalar_select %p27, %s28, %s29
      %p33 = pneg %p27
      %p34 = scmp.eq.s32.totalorder %s18, 1
      %p35 = por %p33, %p34
      %p36 = scmp.ne.s32.totalorder %s28, %s31
      %p37 = scmp.eq.s32.totalorder %s18, 0
      %p38 = por %p36, %p37
      %p39 = scmp.ne.s32.totalorder %s28, %s31
      %p40 = scmp.eq.s32.totalorder %s23, 1
      %p41 = por %p39, %p40
      %p42 = scmp.ne.s32.totalorder %s31, %s32
      %p43 = scmp.eq.s32.totalorder %s23, 0
      %p44 = por %p42, %p43
      %p45 = scmp.ne.s32.totalorder %s31, %s32
      %p46 = scmp.eq.s32.totalorder %s24, 1
      %p47 = por %p45, %p46
      %p49 = scmp.ne.s32.totalorder %s32, %s48
      %p50 = scmp.eq.s32.totalorder %s24, 0
      %p51 = por %p49, %p50
      %s52 = ssub.s32 %s18, %s25
      %p53 = scmp.eq.s32.totalorder %s52, 0
      %s55 = sadd.s32 %s54, 1
      %s56 = scalar_select %p53, %s54, %s55
      %p59 = pneg %p53
      %p60 = scmp.eq.s32.totalorder %s18, 1
      %p61 = por %p59, %p60
      %p62 = scmp.ne.s32.totalorder %s54, %s57
      %p63 = scmp.eq.s32.totalorder %s18, 0
      %p64 = por %p62, %p63
      %p65 = scmp.ne.s32.totalorder %s54, %s57
      %p66 = scmp.eq.s32.totalorder %s23, 1
      %p67 = por %p65, %p66
      %p68 = scmp.ne.s32.totalorder %s57, %s58
      %p69 = scmp.eq.s32.totalorder %s23, 0
      %p70 = por %p68, %p69
      %p71 = scmp.ne.s32.totalorder %s57, %s58
      %p72 = scmp.eq.s32.totalorder %s24, 1
      %p73 = por %p71, %p72
      %p75 = scmp.ne.s32.totalorder %s58, %s74
      %p76 = scmp.eq.s32.totalorder %s24, 0
      %p77 = por %p75, %p76
      %s79 = sadd.s32 %s78, 1
      %p82 = scmp.eq.s32.totalorder %s18, 1
      %p83 = scmp.ne.s32.totalorder %s78, %s80
      %p84 = scmp.eq.s32.totalorder %s18, 0
      %p85 = por %p83, %p84
      %p86 = scmp.ne.s32.totalorder %s78, %s80
      %p87 = scmp.eq.s32.totalorder %s23, 1
      %p88 = por %p86, %p87
      %p89 = scmp.ne.s32.totalorder %s80, %s81
      %p90 = scmp.eq.s32.totalorder %s23, 0
      %p91 = por %p89, %p90
      %p92 = scmp.ne.s32.totalorder %s80, %s81
      %p93 = scmp.eq.s32.totalorder %s24, 1
      %p94 = por %p92, %p93
      %p96 = scmp.ne.s32.totalorder %s81, %s95
      %p97 = scmp.eq.s32.totalorder %s24, 0
      %p98 = por %p96, %p97
      %s100 = sadd.s32 %s99, 1
      %p103 = scmp.eq.s32.totalorder %s18, 1
      %p104 = scmp.ne.s32.totalorder %s99, %s101
      %p105 = scmp.eq.s32.totalorder %s18, 0
      %p106 = por %p104, %p105
      %p107 = scmp.ne.s32.totalorder %s99, %s101
      %p108 = scmp.eq.s32.totalorder %s23, 1
      %p109 = por %p107, %p108
      %p110 = scmp.ne.s32.totalorder %s101, %s102
      %p111 = scmp.eq.s32.totalorder %s23, 0
      %p112 = por %p110, %p111
      %p113 = scmp.ne.s32.totalorder %s101, %s102
      %p114 = scmp.eq.s32.totalorder %s24, 1
      %p115 = por %p113, %p114
      %p117 = scmp.ne.s32.totalorder %s102, %s116
      %p118 = scmp.eq.s32.totalorder %s24, 0
      %p119 = por %p117, %p118
      %s121 = sadd.s32 %s120, 1
      %p124 = scmp.eq.s32.totalorder %s18, 1
      %p125 = scmp.ne.s32.totalorder %s120, %s122
      %p126 = scmp.eq.s32.totalorder %s18, 0
      %p127 = por %p125, %p126
      %p128 = scmp.ne.s32.totalorder %s120, %s122
      %p129 = scmp.eq.s32.totalorder %s23, 1
      %p130 = por %p128, %p129
      %p131 = scmp.ne.s32.totalorder %s122, %s123
      %p132 = scmp.eq.s32.totalorder %s23, 0
      %p133 = por %p131, %p132
      %p134 = scmp.ne.s32.totalorder %s122, %s123
      %p135 = scmp.eq.s32.totalorder %s24, 1
      %p136 = por %p134, %p135
      %p138 = scmp.ne.s32.totalorder %s123, %s137
      %p139 = scmp.eq.s32.totalorder %s24, 0
      %p140 = por %p138, %p139
      %s142 = sadd.s32 %s141, 1
      %p145 = scmp.eq.s32.totalorder %s18, 1
      %p146 = scmp.ne.s32.totalorder %s141, %s143
      %p147 = scmp.eq.s32.totalorder %s18, 0
      %p148 = por %p146, %p147
      %p149 = scmp.ne.s32.totalorder %s141, %s143
      %p150 = scmp.eq.s32.totalorder %s23, 1
      %p151 = por %p149, %p150
      %p152 = scmp.ne.s32.totalorder %s143, %s144
      %p153 = scmp.eq.s32.totalorder %s23, 0
      %p154 = por %p152, %p153
      %p155 = scmp.ne.s32.totalorder %s143, %s144
      %p156 = scmp.eq.s32.totalorder %s24, 1
      %p157 = por %p155, %p156
      %p159 = scmp.ne.s32.totalorder %s144, %s158
      %p160 = scmp.eq.s32.totalorder %s24, 0
      %p161 = por %p159, %p160
      %s163 = sadd.s32 %s162, 1
      %p166 = scmp.eq.s32.totalorder %s18, 1
      %p167 = scmp.ne.s32.totalorder %s162, %s164
      %p168 = scmp.eq.s32.totalorder %s18, 0
      %p169 = por %p167, %p168
      %p170 = scmp.ne.s32.totalorder %s162, %s164
      %p171 = scmp.eq.s32.totalorder %s23, 1
      %p172 = por %p170, %p171
      %p173 = scmp.ne.s32.totalorder %s164, %s165
      %p174 = scmp.eq.s32.totalorder %s23, 0
      %p175 = por %p173, %p174
      %p176 = scmp.ne.s32.totalorder %s164, %s165
      %p177 = scmp.eq.s32.totalorder %s24, 1
      %p178 = por %p176, %p177
      %p180 = scmp.ne.s32.totalorder %s165, %s179
      %p181 = scmp.eq.s32.totalorder %s24, 0
      %p182 = por %p180, %p181
      %s184 = sadd.s32 %s183, 1
      %p187 = scmp.eq.s32.totalorder %s18, 1
      %p188 = scmp.ne.s32.totalorder %s183, %s185
      %p189 = scmp.eq.s32.totalorder %s18, 0
      %p190 = por %p188, %p189
      %p191 = scmp.ne.s32.totalorder %s183, %s185
      %p192 = scmp.eq.s32.totalorder %s23, 1
      %p193 = por %p191, %p192
      %p194 = scmp.ne.s32.totalorder %s185, %s186
      %p195 = scmp.eq.s32.totalorder %s23, 0
      %p196 = por %p194, %p195
      %p197 = scmp.ne.s32.totalorder %s185, %s186
      %p198 = scmp.eq.s32.totalorder %s24, 1
      %p199 = por %p197, %p198
      %p201 = scmp.ne.s32.totalorder %s186, %s200
      %p202 = scmp.eq.s32.totalorder %s24, 0
      %p203 = por %p201, %p202
      %s205 = sadd.s32 %s204, 1
      %p208 = scmp.eq.s32.totalorder %s18, 1
      %p209 = scmp.ne.s32.totalorder %s204, %s206
      %p210 = scmp.eq.s32.totalorder %s18, 0
      %p211 = por %p209, %p210
      %p212 = scmp.ne.s32.totalorder %s204, %s206
      %p213 = scmp.eq.s32.totalorder %s23, 1
      %p214 = por %p212, %p213
      %p215 = scmp.ne.s32.totalorder %s206, %s207
      %p216 = scmp.eq.s32.totalorder %s23, 0
      %p217 = por %p215, %p216
      %p218 = scmp.ne.s32.totalorder %s206, %s207
      %p219 = scmp.eq.s32.totalorder %s24, 1
      %p220 = por %p218, %p219
      %p222 = scmp.ne.s32.totalorder %s207, %s221
      %p223 = scmp.eq.s32.totalorder %s24, 0
      %p224 = por %p222, %p223
      %s225 = ssub.s32 %s18, %s25
      %p226 = scmp.eq.s32.totalorder %s225, 0
      %s228 = sadd.s32 %s227, 1
      %s229 = scalar_select %p226, %s227, %s228
      %p232 = pneg %p226
      %p233 = scmp.eq.s32.totalorder %s18, 1
      %p234 = por %p232, %p233
      %p235 = scmp.ne.s32.totalorder %s227, %s230
      %p236 = scmp.eq.s32.totalorder %s18, 0
      %p237 = por %p235, %p236
      %p238 = scmp.ne.s32.totalorder %s227, %s230
      %p239 = scmp.eq.s32.totalorder %s23, 1
      %p240 = por %p238, %p239
      %p241 = scmp.ne.s32.totalorder %s230, %s231
      %p242 = scmp.eq.s32.totalorder %s23, 0
      %p243 = por %p241, %p242
      %p244 = scmp.ne.s32.totalorder %s230, %s231
      %p245 = scmp.eq.s32.totalorder %s24, 1
      %p246 = por %p244, %p245
      %p248 = scmp.ne.s32.totalorder %s231, %s247
      %p249 = scmp.eq.s32.totalorder %s24, 0
      %p250 = por %p248, %p249
      %p251 = scmp.le.s32.totalorder 1, %s18
      %p252 = scmp.lt.s32.totalorder %s18, 3
      %p253 = pnand %p251, %p252
      %p254 = pneg %p253
      // Predicated region
      $region9: #{tpu_custom_call.1} parent=5 // pred_check
        _
      $region10: #{tpu_custom_call.1} parent=5 // pred_check_branch
        %256 = sbr.rel (%p253) target = $region12
      $region11: #{tpu_custom_call.1} parent=5 // pred_region
        %s257 = ssub.s32 %s18, 1
        // Predicated region
        $region13: #{tpu_custom_call.1} parent=11 // pred_check
          %p258 = pneg %p91
        $region14: #{tpu_custom_call.1} parent=11 // pred_check_branch
          %260 = sbr.rel (%p258) target = $region16
        $region15: #{tpu_custom_call.1} parent=11 // pred_region
          _
        $region16: #{tpu_custom_call.1} parent=11 // pred_fallthru
          _
        // Predicated region
        $region17: #{tpu_custom_call.1} parent=11 // pred_check
          %p261 = pneg %p112
        $region18: #{tpu_custom_call.1} parent=11 // pred_check_branch
          %263 = sbr.rel (%p261) target = $region20
        $region19: #{tpu_custom_call.1} parent=11 // pred_region
          _
        $region20: #{tpu_custom_call.1} parent=11 // pred_fallthru
          _
        // Predicated region
        $region21: #{tpu_custom_call.1} parent=11 // pred_check
          %p264 = pneg %p133
        $region22: #{tpu_custom_call.1} parent=11 // pred_check_branch
          %266 = sbr.rel (%p264) target = $region24
        $region23: #{tpu_custom_call.1} parent=11 // pred_region
          _
        $region24: #{tpu_custom_call.1} parent=11 // pred_fallthru
          _
        // Predicated region
        $region25: #{tpu_custom_call.1} parent=11 // pred_check
          %p267 = pneg %p154
        $region26: #{tpu_custom_call.1} parent=11 // pred_check_branch
          %269 = sbr.rel (%p267) target = $region28
        $region27: #{tpu_custom_call.1} parent=11 // pred_region
          _
        $region28: #{tpu_custom_call.1} parent=11 // pred_fallthru
          _
        // Predicated region
        $region29: #{tpu_custom_call.1} parent=11 // pred_check
          %p270 = pneg %p175
        $region30: #{tpu_custom_call.1} parent=11 // pred_check_branch
          %272 = sbr.rel (%p270) target = $region32
        $region31: #{tpu_custom_call.1} parent=11 // pred_region
          _
        $region32: #{tpu_custom_call.1} parent=11 // pred_fallthru
          _
        // Predicated region
        $region33: #{tpu_custom_call.1} parent=11 // pred_check
          %p273 = pneg %p196
        $region34: #{tpu_custom_call.1} parent=11 // pred_check_branch
          %275 = sbr.rel (%p273) target = $region36
        $region35: #{tpu_custom_call.1} parent=11 // pred_region
          _
        $region36: #{tpu_custom_call.1} parent=11 // pred_fallthru
          _
        // Predicated region
        $region37: #{tpu_custom_call.1} parent=11 // pred_check
          %p276 = pneg %p217
        $region38: #{tpu_custom_call.1} parent=11 // pred_check_branch
          %278 = sbr.rel (%p276) target = $region40
        $region39: #{tpu_custom_call.1} parent=11 // pred_region
          _
        $region40: #{tpu_custom_call.1} parent=11 // pred_fallthru
          _
      $region12: #{tpu_custom_call.1} parent=5 // pred_fallthru
        _
      %p279 = scmp.lt.s32.totalorder %s18, 2
      // Predicated region
      $region41: #{tpu_custom_call.1} parent=5 // pred_check
        %p280 = pneg %p279
      $region42: #{tpu_custom_call.1} parent=5 // pred_check_branch
        %282 = sbr.rel (%p280) target = $region44
      $region43: #{tpu_custom_call.1} parent=5 // pred_region
        // Predicated region
        $region45: #{tpu_custom_call.1} parent=43 // pred_check
          %p283 = pneg %p38
        $region46: #{tpu_custom_call.1} parent=43 // pred_check_branch
          %285 = sbr.rel (%p283) target = $region48
        $region47: #{tpu_custom_call.1} parent=43 // pred_region
          %p286 = scmp.lt.s32.totalorder %s18, 1
          %s287 = scalar_select %p286, %s18, 1
          %s288 = smul.addr %s287, 32
          %s289 = smul.addr %s288, 8
          %s290 = scalar_lea.vmem %s0, %s289
        $region48: #{tpu_custom_call.1} parent=43 // pred_fallthru
          _
        // Predicated region
        $region49: #{tpu_custom_call.1} parent=43 // pred_check
          %p291 = pneg %p64
        $region50: #{tpu_custom_call.1} parent=43 // pred_check_branch
          %293 = sbr.rel (%p291) target = $region52
        $region51: #{tpu_custom_call.1} parent=43 // pred_region
          %p294 = scmp.lt.s32.totalorder %s18, 1
          %s295 = scalar_select %p294, %s18, 1
          %s296 = smul.addr %s295, 8
          %s297 = smul.addr %s296, 8
          %s298 = scalar_lea.vmem %s1, %s297
        $region52: #{tpu_custom_call.1} parent=43 // pred_fallthru
          _
      $region44: #{tpu_custom_call.1} parent=5 // pred_fallthru
        _
      %p299 = scmp.le.s32.totalorder 1, %s18
      %p300 = scmp.lt.s32.totalorder %s18, 3
      %p301 = pnand %p299, %p300
      %p302 = pneg %p301
      // Predicated region
      $region53: #{tpu_custom_call.1} parent=5 // pred_check
        _
      $region54: #{tpu_custom_call.1} parent=5 // pred_check_branch
        %304 = sbr.rel (%p301) target = $region56
      $region55: #{tpu_custom_call.1} parent=5 // pred_region
        %s305 = ssub.s32 %s18, 1
        %p306 = scmp.lt.s32.totalorder %s23, 1
        %s307 = scalar_select %p306, %s23, 1
        %s308 = smul.addr %s307, 32
        %s309 = smul.addr %s308, 8
        %s310 = scalar_lea.vmem %s0, %s309
        %p311 = pneg %p44
        %p312 = pneg %p41
        %p313 = scmp.lt.s32.totalorder %s23, 1
        %s314 = scalar_select %p313, %s23, 1
        %s315 = smul.addr %s314, 8
        %s316 = smul.addr %s315, 8
        %s317 = scalar_lea.vmem %s1, %s316
        %p318 = pneg %p70
        %p319 = pneg %p67
        %p320 = pneg %p91
        %p321 = pneg %p88
        %p322 = pneg %p112
        %p323 = pneg %p109
        %p324 = pneg %p133
        %p325 = pneg %p130
        %p326 = pneg %p154
        %p327 = pneg %p151
        %p328 = pneg %p175
        %p329 = pneg %p172
        %p330 = pneg %p196
        %p331 = pneg %p193
        %p332 = pneg %p217
        %p333 = pneg %p214
        %p334 = pneg %p243
        %p335 = pneg %p240
        %s336 = sand.u32 %s230, 1
        %s337 = scalar_lea.sflag [#allocation3], %s336
        %s338 = sand.u32 %s230, 1
        %s339 = smul.addr %s338, 64
        %s340 = scalar_lea.vmem [#allocation2], %s339
        %p341 = scmp.lt.s32.totalorder %s23, 1
        %s342 = scalar_select %p341, %s23, 1
        %s343 = smul.addr %s342, 32
        %s344 = smul.addr %s343, 8
        %s345 = scalar_lea.vmem %s0, %s344
        %p346 = scmp.lt.s32.totalorder %s23, 1
        %s347 = scalar_select %p346, %s23, 1
        %s348 = smul.addr %s347, 8
        %s349 = smul.addr %s348, 8
        %s350 = scalar_lea.vmem %s1, %s349
        %v351 = vld [vmem:[%s345] sm:$0xff]
        %v352 = vld [vmem:[%s345 + $0x8] sm:$0xff]
        %v353 = vld [vmem:[%s345 + $0x10] sm:$0xff]
        %v354 = vld [vmem:[%s345 + $0x18] sm:$0xff]
        %v355 = vld [vmem:[%s345 + $0x20] sm:$0xff]
        %v356 = vld [vmem:[%s345 + $0x28] sm:$0xff]
        %v357 = vld [vmem:[%s345 + $0x30] sm:$0xff]
        %v358 = vld [vmem:[%s345 + $0x38] sm:$0xff]
        %v359 = vld [vmem:[%s345 + $0x40] sm:$0xff]
        %v360 = vld [vmem:[%s345 + $0x48] sm:$0xff]
        %v361 = vld [vmem:[%s345 + $0x50] sm:$0xff]
        %v362 = vld [vmem:[%s345 + $0x58] sm:$0xff]
        %v363 = vld [vmem:[%s345 + $0x60] sm:$0xff]
        %v364 = vld [vmem:[%s345 + $0x68] sm:$0xff]
        %v365 = vld [vmem:[%s345 + $0x70] sm:$0xff]
        %v366 = vld [vmem:[%s345 + $0x78] sm:$0xff]
        %v367 = vld [vmem:[%s345 + $0x80] sm:$0xff]
        %v368 = vld [vmem:[%s345 + $0x88] sm:$0xff]
        %v369 = vld [vmem:[%s345 + $0x90] sm:$0xff]
        %v370 = vld [vmem:[%s345 + $0x98] sm:$0xff]
        %v371 = vld [vmem:[%s345 + $0xa0] sm:$0xff]
        %v372 = vld [vmem:[%s345 + $0xa8] sm:$0xff]
        %v373 = vld [vmem:[%s345 + $0xb0] sm:$0xff]
        %v374 = vld [vmem:[%s345 + $0xb8] sm:$0xff]
        %v375 = vld [vmem:[%s345 + $0xc0] sm:$0xff]
        %v376 = vld [vmem:[%s345 + $0xc8] sm:$0xff]
        %v377 = vld [vmem:[%s345 + $0xd0] sm:$0xff]
        %v378 = vld [vmem:[%s345 + $0xd8] sm:$0xff]
        %v379 = vld [vmem:[%s345 + $0xe0] sm:$0xff]
        %v380 = vld [vmem:[%s345 + $0xe8] sm:$0xff]
        %v381 = vld [vmem:[%s345 + $0xf0] sm:$0xff]
        %v382 = vld [vmem:[%s345 + $0xf8] sm:$0xff]
        %v383 = vld [vmem:[%s350] sm:$0xff]
        %v384 = vld [vmem:[%s350 + $0x8] sm:$0xff]
        %v385 = vld [vmem:[%s350 + $0x10] sm:$0xff]
        %v386 = vld [vmem:[%s350 + $0x18] sm:$0xff]
        %v387 = vld [vmem:[%s350 + $0x20] sm:$0xff]
        %v388 = vld [vmem:[%s350 + $0x28] sm:$0xff]
        %v389 = vld [vmem:[%s350 + $0x30] sm:$0xff]
        %v390 = vld [vmem:[%s350 + $0x38] sm:$0xff]
        %v391 = vld [vmem:[%s2] sm:$0xff]
        %v392 = vld [vmem:[%s2 + $0x8] sm:$0xff]
        %v393 = vld [vmem:[%s2 + $0x10] sm:$0xff]
        %v394 = vld [vmem:[%s2 + $0x18] sm:$0xff]
        %v395 = vld [vmem:[%s3] sm:$0x1]
        %v397 = vlaneseq
        %v398 = vshrl.u32 %v397, 7
        %v399 = vsub.s32 0, %v398
        %v400 = vrot.slane %v395, %v399
        %vm402 = vcmask 261120
        %v404 = vsel %vm402, %v351, 0
        %v407 = vsel %vm402, %v352, 0
        %v410 = vsel %vm402, %v353, 0
        %v413 = vsel %vm402, %v354, 0
        %v416 = vsel %vm402, %v355, 0
        %v419 = vsel %vm402, %v356, 0
        %v422 = vsel %vm402, %v357, 0
        %v425 = vsel %vm402, %v358, 0
        %v428 = vsel %vm402, %v359, 0
        %v431 = vsel %vm402, %v360, 0
        %v434 = vsel %vm402, %v361, 0
        %v437 = vsel %vm402, %v362, 0
        %v440 = vsel %vm402, %v363, 0
        %v443 = vsel %vm402, %v364, 0
        %v446 = vsel %vm402, %v365, 0
        %v449 = vsel %vm402, %v366, 0
        %v452 = vsel %vm402, %v367, 0
        %v455 = vsel %vm402, %v368, 0
        %v458 = vsel %vm402, %v369, 0
        %v461 = vsel %vm402, %v370, 0
        %v464 = vsel %vm402, %v371, 0
        %v467 = vsel %vm402, %v372, 0
        %v470 = vsel %vm402, %v373, 0
        %v473 = vsel %vm402, %v374, 0
        %v476 = vsel %vm402, %v375, 0
        %v479 = vsel %vm402, %v376, 0
        %v482 = vsel %vm402, %v377, 0
        %v485 = vsel %vm402, %v378, 0
        %v488 = vsel %vm402, %v379, 0
        %v491 = vsel %vm402, %v380, 0
        %v494 = vsel %vm402, %v381, 0
        %v497 = vsel %vm402, %v382, 0
        %499 = vmatprep.subr.mxu0 0.0
        %500 = vmatpush1.msra.mxu0 0.0
        %501 = vmatprep.subr.mxu0 0.0
        %502 = vmatpush1.msra.mxu0 0.0
        %503 = vmatprep.subr.mxu0 0.0
        %504 = vmatpush1.msra.mxu0 0.0
        %505 = vmatprep.subr.mxu0 0.0
        %506 = vmatpush1.msra.mxu0 0.0
        %507 = vmatprep.subr.mxu0 0.0
        %508 = vmatpush1.msra.mxu0 0.0
        %509 = vmatprep.subr.mxu0 0.0
        %510 = vmatpush1.msra.mxu0 0.0
        %511 = vmatprep.subr.mxu0 0.0
        %512 = vmatpush1.msra.mxu0 0.0
        %513 = vmatprep.subr.mxu0 0.0
        %514 = vmatpush1.msra.mxu0 0.0
        %515 = vmatprep.subr.mxu0 0.0
        %516 = vmatpush1.msra.mxu0 0.0
        %517 = vmatprep.subr.mxu0 0.0
        %518 = vmatpush1.msra.mxu0 0.0
        %519 = vmatprep.subr.mxu0 0.0
        %520 = vmatpush1.msra.mxu0 0.0
        %521 = vmatprep.subr.mxu0 0.0
        %522 = vmatpush1.msra.mxu0 0.0
        %523 = vmatprep.subr.mxu0 0.0
        %524 = vmatpush1.msra.mxu0 %v394
        %525 = vmatprep.subr.mxu0 0.0
        %526 = vmatpush1.msra.mxu0 %v393
        %527 = vmatprep.subr.mxu0 0.0
        %528 = vmatpush1.msra.mxu0 %v392
        %529 = vmatprep.subr.mxu0 0.0
        %530 = vmatpush1.msra.mxu0 %v391
        %531 = vmatprep.subr.mxu0 0.0
        %532 = vmatpush2.msra.mxu0 0.0
        %533 = vmatprep.subr.mxu0 0.0
        %534 = vmatpush2.msra.mxu0 0.0
        %535 = vmatprep.subr.mxu0 0.0
        %536 = vmatpush2.msra.mxu0 0.0
        %537 = vmatprep.subr.mxu0 0.0
        %538 = vmatpush2.msra.mxu0 0.0
        %539 = vmatprep.subr.mxu0 0.0
        %540 = vmatpush2.msra.mxu0 0.0
        %541 = vmatprep.subr.mxu0 0.0
        %542 = vmatpush2.msra.mxu0 0.0
        %543 = vmatprep.subr.mxu0 0.0
        %544 = vmatpush2.msra.mxu0 0.0
        %545 = vmatprep.subr.mxu0 0.0
        %546 = vmatpush2.msra.mxu0 0.0
        %547 = vmatprep.subr.mxu0 0.0
        %548 = vmatpush2.msra.mxu0 0.0
        %549 = vmatprep.subr.mxu0 0.0
        %550 = vmatpush2.msra.mxu0 0.0
        %551 = vmatprep.subr.mxu0 0.0
        %552 = vmatpush2.msra.mxu0 0.0
        %553 = vmatprep.subr.mxu0 0.0
        %554 = vmatpush2.msra.mxu0 0.0
        %555 = vmatprep.subr.mxu0 0.0
        %556 = vmatpush2.msra.mxu0 0.0
        %557 = vmatprep.subr.mxu0 0.0
        %558 = vmatpush2.msra.mxu0 0.0
        %559 = vmatprep.subr.mxu0 0.0
        %560 = vmatpush2.msra.mxu0 0.0
        %561 = vmatprep.subr.mxu0 0.0
        %562 = vmatpush2.msra.mxu0 0.0
        %563 = vmatprep.mubr.f32.mxu0 0.0
        %564 = vmatmul.mubr.f32.gmra.mxu0 %v404
        %v565 = vpop.f32.mrf.mxu0
        %v566 = vadd.f32 %v400, %v565
        %v567 = vpop.f32.mrf.mxu0
        %568 = vmatprep.mubr.f32.mxu0 0.0
        %569 = vmatmul.mubr.f32.gmra.mxu0 %v407
        %v570 = vpop.f32.mrf.mxu0
        %v571 = vadd.f32 %v400, %v570
        %v572 = vpop.f32.mrf.mxu0
        %573 = vmatprep.mubr.f32.mxu0 0.0
        %574 = vmatmul.mubr.f32.gmra.mxu0 %v410
        %v575 = vpop.f32.mrf.mxu0
        %v576 = vadd.f32 %v400, %v575
        %v577 = vpop.f32.mrf.mxu0
        %578 = vmatprep.mubr.f32.mxu0 0.0
        %579 = vmatmul.mubr.f32.gmra.mxu0 %v413
        %v580 = vpop.f32.mrf.mxu0
        %v581 = vadd.f32 %v400, %v580
        %v582 = vpop.f32.mrf.mxu0
        %583 = vmatprep.mubr.f32.mxu0 0.0
        %584 = vmatmul.mubr.f32.gmra.mxu0 %v416
        %v585 = vpop.f32.mrf.mxu0
        %v586 = vadd.f32 %v400, %v585
        %v587 = vpop.f32.mrf.mxu0
        %588 = vmatprep.mubr.f32.mxu0 0.0
        %589 = vmatmul.mubr.f32.gmra.mxu0 %v419
        %v590 = vpop.f32.mrf.mxu0
        %v591 = vadd.f32 %v400, %v590
        %v592 = vpop.f32.mrf.mxu0
        %593 = vmatprep.mubr.f32.mxu0 0.0
        %594 = vmatmul.mubr.f32.gmra.mxu0 %v422
        %v595 = vpop.f32.mrf.mxu0
        %v596 = vadd.f32 %v400, %v595
        %v597 = vpop.f32.mrf.mxu0
        %598 = vmatprep.mubr.f32.mxu0 0.0
        %599 = vmatmul.mubr.f32.gmra.mxu0 %v425
        %v600 = vpop.f32.mrf.mxu0
        %v601 = vadd.f32 %v400, %v600
        %v602 = vpop.f32.mrf.mxu0
        %603 = vmatprep.mubr.f32.mxu0 0.0
        %604 = vmatmul.mubr.f32.gmra.mxu0 %v428
        %v605 = vpop.f32.mrf.mxu0
        %v606 = vadd.f32 %v400, %v605
        %v607 = vpop.f32.mrf.mxu0
        %608 = vmatprep.mubr.f32.mxu0 0.0
        %609 = vmatmul.mubr.f32.gmra.mxu0 %v431
        %v610 = vpop.f32.mrf.mxu0
        %v611 = vadd.f32 %v400, %v610
        %v612 = vpop.f32.mrf.mxu0
        %613 = vmatprep.mubr.f32.mxu0 0.0
        %614 = vmatmul.mubr.f32.gmra.mxu0 %v434
        %v615 = vpop.f32.mrf.mxu0
        %v616 = vadd.f32 %v400, %v615
        %v617 = vpop.f32.mrf.mxu0
        %618 = vmatprep.mubr.f32.mxu0 0.0
        %619 = vmatmul.mubr.f32.gmra.mxu0 %v437
        %v620 = vpop.f32.mrf.mxu0
        %v621 = vadd.f32 %v400, %v620
        %v622 = vpop.f32.mrf.mxu0
        %623 = vmatprep.mubr.f32.mxu0 0.0
        %624 = vmatmul.mubr.f32.gmra.mxu0 %v440
        %v625 = vpop.f32.mrf.mxu0
        %v626 = vadd.f32 %v400, %v625
        %v627 = vpop.f32.mrf.mxu0
        %628 = vmatprep.mubr.f32.mxu0 0.0
        %629 = vmatmul.mubr.f32.gmra.mxu0 %v443
        %v630 = vpop.f32.mrf.mxu0
        %v631 = vadd.f32 %v400, %v630
        %v632 = vpop.f32.mrf.mxu0
        %633 = vmatprep.mubr.f32.mxu0 0.0
        %634 = vmatmul.mubr.f32.gmra.mxu0 %v446
        %v635 = vpop.f32.mrf.mxu0
        %v636 = vadd.f32 %v400, %v635
        %v637 = vpop.f32.mrf.mxu0
        %638 = vmatprep.mubr.f32.mxu0 0.0
        %639 = vmatmul.mubr.f32.gmra.mxu0 %v449
        %v640 = vpop.f32.mrf.mxu0
        %v641 = vadd.f32 %v400, %v640
        %v642 = vpop.f32.mrf.mxu0
        %643 = vmatprep.mubr.f32.mxu0 0.0
        %644 = vmatmul.mubr.f32.gmra.mxu0 %v452
        %v645 = vpop.f32.mrf.mxu0
        %v646 = vadd.f32 %v400, %v645
        %v647 = vpop.f32.mrf.mxu0
        %648 = vmatprep.mubr.f32.mxu0 0.0
        %649 = vmatmul.mubr.f32.gmra.mxu0 %v455
        %v650 = vpop.f32.mrf.mxu0
        %v651 = vadd.f32 %v400, %v650
        %v652 = vpop.f32.mrf.mxu0
        %653 = vmatprep.mubr.f32.mxu0 0.0
        %654 = vmatmul.mubr.f32.gmra.mxu0 %v458
        %v655 = vpop.f32.mrf.mxu0
        %v656 = vadd.f32 %v400, %v655
        %v657 = vpop.f32.mrf.mxu0
        %658 = vmatprep.mubr.f32.mxu0 0.0
        %659 = vmatmul.mubr.f32.gmra.mxu0 %v461
        %v660 = vpop.f32.mrf.mxu0
        %v661 = vadd.f32 %v400, %v660
        %v662 = vpop.f32.mrf.mxu0
        %663 = vmatprep.mubr.f32.mxu0 0.0
        %664 = vmatmul.mubr.f32.gmra.mxu0 %v464
        %v665 = vpop.f32.mrf.mxu0
        %v666 = vadd.f32 %v400, %v665
        %v667 = vpop.f32.mrf.mxu0
        %668 = vmatprep.mubr.f32.mxu0 0.0
        %669 = vmatmul.mubr.f32.gmra.mxu0 %v467
        %v670 = vpop.f32.mrf.mxu0
        %v671 = vadd.f32 %v400, %v670
        %v672 = vpop.f32.mrf.mxu0
        %673 = vmatprep.mubr.f32.mxu0 0.0
        %674 = vmatmul.mubr.f32.gmra.mxu0 %v470
        %v675 = vpop.f32.mrf.mxu0
        %v676 = vadd.f32 %v400, %v675
        %v677 = vpop.f32.mrf.mxu0
        %678 = vmatprep.mubr.f32.mxu0 0.0
        %679 = vmatmul.mubr.f32.gmra.mxu0 %v473
        %v680 = vpop.f32.mrf.mxu0
        %v681 = vadd.f32 %v400, %v680
        %v682 = vpop.f32.mrf.mxu0
        %683 = vmatprep.mubr.f32.mxu0 0.0
        %684 = vmatmul.mubr.f32.gmra.mxu0 %v476
        %v685 = vpop.f32.mrf.mxu0
        %v686 = vadd.f32 %v400, %v685
        %v687 = vpop.f32.mrf.mxu0
        %688 = vmatprep.mubr.f32.mxu0 0.0
        %689 = vmatmul.mubr.f32.gmra.mxu0 %v479
        %v690 = vpop.f32.mrf.mxu0
        %v691 = vadd.f32 %v400, %v690
        %v692 = vpop.f32.mrf.mxu0
        %693 = vmatprep.mubr.f32.mxu0 0.0
        %694 = vmatmul.mubr.f32.gmra.mxu0 %v482
        %v695 = vpop.f32.mrf.mxu0
        %v696 = vadd.f32 %v400, %v695
        %v697 = vpop.f32.mrf.mxu0
        %698 = vmatprep.mubr.f32.mxu0 0.0
        %699 = vmatmul.mubr.f32.gmra.mxu0 %v485
        %v700 = vpop.f32.mrf.mxu0
        %v701 = vadd.f32 %v400, %v700
        %v702 = vpop.f32.mrf.mxu0
        %703 = vmatprep.mubr.f32.mxu0 0.0
        %704 = vmatmul.mubr.f32.gmra.mxu0 %v488
        %v705 = vpop.f32.mrf.mxu0
        %v706 = vadd.f32 %v400, %v705
        %v707 = vpop.f32.mrf.mxu0
        %708 = vmatprep.mubr.f32.mxu0 0.0
        %709 = vmatmul.mubr.f32.gmra.mxu0 %v491
        %v710 = vpop.f32.mrf.mxu0
        %v711 = vadd.f32 %v400, %v710
        %v712 = vpop.f32.mrf.mxu0
        %713 = vmatprep.mubr.f32.mxu0 0.0
        %714 = vmatmul.mubr.f32.gmra.mxu0 %v494
        %v715 = vpop.f32.mrf.mxu0
        %v716 = vadd.f32 %v400, %v715
        %v717 = vpop.f32.mrf.mxu0
        %718 = vmatprep.mubr.f32.mxu0 0.0
        %719 = vmatmul.mubr.f32.gmra.mxu0 %v497
        %v720 = vpop.f32.mrf.mxu0
        %v721 = vadd.f32 %v400, %v720
        %v722 = vpop.f32.mrf.mxu0
        %723 = vdwg.mxu0
        %v724 = vld [vmem:[%s4] sm:$0xff]
        %v725 = vld [vmem:[%s4 + $0x8] sm:$0xff]
        %v726 = vld [vmem:[%s4 + $0x10] sm:$0xff]
        %v727 = vld [vmem:[%s4 + $0x18] sm:$0xff]
        %v728 = vld [vmem:[%s5] sm:$0x1]
        %v730 = vlaneseq
        %v731 = vshrl.u32 %v730, 7
        %v732 = vsub.s32 0, %v731
        %v733 = vrot.slane %v728, %v732
        %v736 = vsel %vm402, %v383, 0
        %v739 = vsel %vm402, %v384, 0
        %v742 = vsel %vm402, %v385, 0
        %v745 = vsel %vm402, %v386, 0
        %v748 = vsel %vm402, %v387, 0
        %v751 = vsel %vm402, %v388, 0
        %v754 = vsel %vm402, %v389, 0
        %v757 = vsel %vm402, %v390, 0
        %759 = vmatprep.subr.mxu0 0.0
        %760 = vmatpush1.msra.mxu0 0.0
        %761 = vmatprep.subr.mxu0 0.0
        %762 = vmatpush1.msra.mxu0 0.0
        %763 = vmatprep.subr.mxu0 0.0
        %764 = vmatpush1.msra.mxu0 0.0
        %765 = vmatprep.subr.mxu0 0.0
        %766 = vmatpush1.msra.mxu0 0.0
        %767 = vmatprep.subr.mxu0 0.0
        %768 = vmatpush1.msra.mxu0 0.0
        %769 = vmatprep.subr.mxu0 0.0
        %770 = vmatpush1.msra.mxu0 0.0
        %771 = vmatprep.subr.mxu0 0.0
        %772 = vmatpush1.msra.mxu0 0.0
        %773 = vmatprep.subr.mxu0 0.0
        %774 = vmatpush1.msra.mxu0 0.0
        %775 = vmatprep.subr.mxu0 0.0
        %776 = vmatpush1.msra.mxu0 0.0
        %777 = vmatprep.subr.mxu0 0.0
        %778 = vmatpush1.msra.mxu0 0.0
        %779 = vmatprep.subr.mxu0 0.0
        %780 = vmatpush1.msra.mxu0 0.0
        %781 = vmatprep.subr.mxu0 0.0
        %782 = vmatpush1.msra.mxu0 0.0
        %783 = vmatprep.subr.mxu0 0.0
        %784 = vmatpush1.msra.mxu0 %v727
        %785 = vmatprep.subr.mxu0 0.0
        %786 = vmatpush1.msra.mxu0 %v726
        %787 = vmatprep.subr.mxu0 0.0
        %788 = vmatpush1.msra.mxu0 %v725
        %789 = vmatprep.subr.mxu0 0.0
        %790 = vmatpush1.msra.mxu0 %v724
        %791 = vmatprep.subr.mxu0 0.0
        %792 = vmatpush2.msra.mxu0 0.0
        %793 = vmatprep.subr.mxu0 0.0
        %794 = vmatpush2.msra.mxu0 0.0
        %795 = vmatprep.subr.mxu0 0.0
        %796 = vmatpush2.msra.mxu0 0.0
        %797 = vmatprep.subr.mxu0 0.0
        %798 = vmatpush2.msra.mxu0 0.0
        %799 = vmatprep.subr.mxu0 0.0
        %800 = vmatpush2.msra.mxu0 0.0
        %801 = vmatprep.subr.mxu0 0.0
        %802 = vmatpush2.msra.mxu0 0.0
        %803 = vmatprep.subr.mxu0 0.0
        %804 = vmatpush2.msra.mxu0 0.0
        %805 = vmatprep.subr.mxu0 0.0
        %806 = vmatpush2.msra.mxu0 0.0
        %807 = vmatprep.subr.mxu0 0.0
        %808 = vmatpush2.msra.mxu0 0.0
        %809 = vmatprep.subr.mxu0 0.0
        %810 = vmatpush2.msra.mxu0 0.0
        %811 = vmatprep.subr.mxu0 0.0
        %812 = vmatpush2.msra.mxu0 0.0
        %813 = vmatprep.subr.mxu0 0.0
        %814 = vmatpush2.msra.mxu0 0.0
        %815 = vmatprep.subr.mxu0 0.0
        %816 = vmatpush2.msra.mxu0 0.0
        %817 = vmatprep.subr.mxu0 0.0
        %818 = vmatpush2.msra.mxu0 0.0
        %819 = vmatprep.subr.mxu0 0.0
        %820 = vmatpush2.msra.mxu0 0.0
        %821 = vmatprep.subr.mxu0 0.0
        %822 = vmatpush2.msra.mxu0 0.0
        %823 = vmatprep.mubr.f32.mxu0 0.0
        %824 = vmatmul.mubr.f32.gmra.mxu0 %v736
        %v825 = vpop.f32.mrf.mxu0
        %v826 = vadd.f32 %v733, %v825
        %v827 = vpop.f32.mrf.mxu0
        %828 = vmatprep.mubr.f32.mxu0 0.0
        %829 = vmatmul.mubr.f32.gmra.mxu0 %v739
        %v830 = vpop.f32.mrf.mxu0
        %v831 = vadd.f32 %v733, %v830
        %v832 = vpop.f32.mrf.mxu0
        %833 = vmatprep.mubr.f32.mxu0 0.0
        %834 = vmatmul.mubr.f32.gmra.mxu0 %v742
        %v835 = vpop.f32.mrf.mxu0
        %v836 = vadd.f32 %v733, %v835
        %v837 = vpop.f32.mrf.mxu0
        %838 = vmatprep.mubr.f32.mxu0 0.0
        %839 = vmatmul.mubr.f32.gmra.mxu0 %v745
        %v840 = vpop.f32.mrf.mxu0
        %v841 = vadd.f32 %v733, %v840
        %v842 = vpop.f32.mrf.mxu0
        %843 = vmatprep.mubr.f32.mxu0 0.0
        %844 = vmatmul.mubr.f32.gmra.mxu0 %v748
        %v845 = vpop.f32.mrf.mxu0
        %v846 = vadd.f32 %v733, %v845
        %v847 = vpop.f32.mrf.mxu0
        %848 = vmatprep.mubr.f32.mxu0 0.0
        %849 = vmatmul.mubr.f32.gmra.mxu0 %v751
        %v850 = vpop.f32.mrf.mxu0
        %v851 = vadd.f32 %v733, %v850
        %v852 = vpop.f32.mrf.mxu0
        %853 = vmatprep.mubr.f32.mxu0 0.0
        %854 = vmatmul.mubr.f32.gmra.mxu0 %v754
        %v855 = vpop.f32.mrf.mxu0
        %v856 = vadd.f32 %v733, %v855
        %v857 = vpop.f32.mrf.mxu0
        %858 = vmatprep.mubr.f32.mxu0 0.0
        %859 = vmatmul.mubr.f32.gmra.mxu0 %v757
        %v860 = vpop.f32.mrf.mxu0
        %v861 = vadd.f32 %v733, %v860
        %v862 = vpop.f32.mrf.mxu0
        %863 = vdwg.mxu0
        %v864 = vmax.f32 %v566, 0.0
        %v865 = vmax.f32 %v571, 0.0
        %v866 = vmax.f32 %v576, 0.0
        %v867 = vmax.f32 %v581, 0.0
        %v868 = vmax.f32 %v586, 0.0
        %v869 = vmax.f32 %v591, 0.0
        %v870 = vmax.f32 %v596, 0.0
        %v871 = vmax.f32 %v601, 0.0
        %v872 = vmax.f32 %v606, 0.0
        %v873 = vmax.f32 %v611, 0.0
        %v874 = vmax.f32 %v616, 0.0
        %v875 = vmax.f32 %v621, 0.0
        %v876 = vmax.f32 %v626, 0.0
        %v877 = vmax.f32 %v631, 0.0
        %v878 = vmax.f32 %v636, 0.0
        %v879 = vmax.f32 %v641, 0.0
        %v880 = vmax.f32 %v646, 0.0
        %v881 = vmax.f32 %v651, 0.0
        %v882 = vmax.f32 %v656, 0.0
        %v883 = vmax.f32 %v661, 0.0
        %v884 = vmax.f32 %v666, 0.0
        %v885 = vmax.f32 %v671, 0.0
        %v886 = vmax.f32 %v676, 0.0
        %v887 = vmax.f32 %v681, 0.0
        %v888 = vmax.f32 %v686, 0.0
        %v889 = vmax.f32 %v691, 0.0
        %v890 = vmax.f32 %v696, 0.0
        %v891 = vmax.f32 %v701, 0.0
        %v892 = vmax.f32 %v706, 0.0
        %v893 = vmax.f32 %v711, 0.0
        %v894 = vmax.f32 %v716, 0.0
        %v895 = vmax.f32 %v721, 0.0
        %v896 = vmax.f32 %v826, 0.0
        %v897 = vmax.f32 %v831, 0.0
        %v898 = vmax.f32 %v836, 0.0
        %v899 = vmax.f32 %v841, 0.0
        %v900 = vmax.f32 %v846, 0.0
        %v901 = vmax.f32 %v851, 0.0
        %v902 = vmax.f32 %v856, 0.0
        %v903 = vmax.f32 %v861, 0.0
        %v905 = vsel %vm402, %v566, 0
        %v908 = vsel %vm402, %v571, 0
        %v911 = vsel %vm402, %v576, 0
        %v914 = vsel %vm402, %v581, 0
        %v917 = vsel %vm402, %v586, 0
        %v920 = vsel %vm402, %v591, 0
        %v923 = vsel %vm402, %v596, 0
        %v926 = vsel %vm402, %v601, 0
        %v929 = vsel %vm402, %v606, 0
        %v932 = vsel %vm402, %v611, 0
        %v935 = vsel %vm402, %v616, 0
        %v938 = vsel %vm402, %v621, 0
        %v941 = vsel %vm402, %v626, 0
        %v944 = vsel %vm402, %v631, 0
        %v947 = vsel %vm402, %v636, 0
        %v950 = vsel %vm402, %v641, 0
        %v953 = vsel %vm402, %v646, 0
        %v956 = vsel %vm402, %v651, 0
        %v959 = vsel %vm402, %v656, 0
        %v962 = vsel %vm402, %v661, 0
        %v965 = vsel %vm402, %v666, 0
        %v968 = vsel %vm402, %v671, 0
        %v971 = vsel %vm402, %v676, 0
        %v974 = vsel %vm402, %v681, 0
        %v977 = vsel %vm402, %v686, 0
        %v980 = vsel %vm402, %v691, 0
        %v983 = vsel %vm402, %v696, 0
        %v986 = vsel %vm402, %v701, 0
        %v989 = vsel %vm402, %v706, 0
        %v992 = vsel %vm402, %v711, 0
        %v995 = vsel %vm402, %v716, 0
        %v998 = vsel %vm402, %v721, 0
        %v1001 = vsel %vm402, %v826, 0
        %v1004 = vsel %vm402, %v831, 0
        %v1007 = vsel %vm402, %v836, 0
        %v1010 = vsel %vm402, %v841, 0
        %v1013 = vsel %vm402, %v846, 0
        %v1016 = vsel %vm402, %v851, 0
        %v1019 = vsel %vm402, %v856, 0
        %v1022 = vsel %vm402, %v861, 0
        %1024 = vmatprep.subr.mxu0 0.0
        %1025 = vmatpush1.xpose.msra.mxu0 0.0
        %1026 = vmatprep.subr.mxu0 0.0
        %1027 = vmatpush1.xpose.msra.mxu0 0.0
        %1028 = vmatprep.subr.mxu0 0.0
        %1029 = vmatpush1.xpose.msra.mxu0 0.0
        %1030 = vmatprep.subr.mxu0 0.0
        %1031 = vmatpush1.xpose.msra.mxu0 0.0
        %1032 = vmatprep.subr.mxu0 0.0
        %1033 = vmatpush1.xpose.msra.mxu0 0.0
        %1034 = vmatprep.subr.mxu0 0.0
        %1035 = vmatpush1.xpose.msra.mxu0 0.0
        %1036 = vmatprep.subr.mxu0 0.0
        %1037 = vmatpush1.xpose.msra.mxu0 0.0
        %1038 = vmatprep.subr.mxu0 0.0
        %1039 = vmatpush1.xpose.msra.mxu0 0.0
        %1040 = vmatprep.subr.mxu0 0.0
        %1041 = vmatpush1.xpose.msra.mxu0 %v1022
        %1042 = vmatprep.subr.mxu0 0.0
        %1043 = vmatpush1.xpose.msra.mxu0 %v1019
        %1044 = vmatprep.subr.mxu0 0.0
        %1045 = vmatpush1.xpose.msra.mxu0 %v1016
        %1046 = vmatprep.subr.mxu0 0.0
        %1047 = vmatpush1.xpose.msra.mxu0 %v1013
        %1048 = vmatprep.subr.mxu0 0.0
        %1049 = vmatpush1.xpose.msra.mxu0 %v1010
        %1050 = vmatprep.subr.mxu0 0.0
        %1051 = vmatpush1.xpose.msra.mxu0 %v1007
        %1052 = vmatprep.subr.mxu0 0.0
        %1053 = vmatpush1.xpose.msra.mxu0 %v1004
        %1054 = vmatprep.subr.mxu0 0.0
        %1055 = vmatpush1.xpose.msra.mxu0 %v1001
        %1056 = vmatprep.subr.mxu0 0.0
        %1057 = vmatpush2.xpose.msra.mxu0 0.0
        %1058 = vmatprep.subr.mxu0 0.0
        %1059 = vmatpush2.xpose.msra.mxu0 0.0
        %1060 = vmatprep.subr.mxu0 0.0
        %1061 = vmatpush2.xpose.msra.mxu0 0.0
        %1062 = vmatprep.subr.mxu0 0.0
        %1063 = vmatpush2.xpose.msra.mxu0 0.0
        %1064 = vmatprep.subr.mxu0 0.0
        %1065 = vmatpush2.xpose.msra.mxu0 0.0
        %1066 = vmatprep.subr.mxu0 0.0
        %1067 = vmatpush2.xpose.msra.mxu0 0.0
        %1068 = vmatprep.subr.mxu0 0.0
        %1069 = vmatpush2.xpose.msra.mxu0 0.0
        %1070 = vmatprep.subr.mxu0 0.0
        %1071 = vmatpush2.xpose.msra.mxu0 0.0
        %1072 = vmatprep.subr.mxu0 0.0
        %1073 = vmatpush2.xpose.msra.mxu0 0.0
        %1074 = vmatprep.subr.mxu0 0.0
        %1075 = vmatpush2.xpose.msra.mxu0 0.0
        %1076 = vmatprep.subr.mxu0 0.0
        %1077 = vmatpush2.xpose.msra.mxu0 0.0
        %1078 = vmatprep.subr.mxu0 0.0
        %1079 = vmatpush2.xpose.msra.mxu0 0.0
        %1080 = vmatprep.subr.mxu0 0.0
        %1081 = vmatpush2.xpose.msra.mxu0 0.0
        %1082 = vmatprep.subr.mxu0 0.0
        %1083 = vmatpush2.xpose.msra.mxu0 0.0
        %1084 = vmatprep.subr.mxu0 0.0
        %1085 = vmatpush2.xpose.msra.mxu0 0.0
        %1086 = vmatprep.subr.mxu0 0.0
        %1087 = vmatpush2.xpose.msra.mxu0 0.0
        %1088 = vmatprep.mubr.f32.mxu0 0.0
        %1089 = vmatmul.mubr.f32.gmra.mxu0 %v905
        %v1090 = vpop.f32.mrf.mxu0
        %v1091 = vadd.f32 0.0, %v1090
        %v1092 = vpop.f32.mrf.mxu0
        %1093 = vmatprep.mubr.f32.mxu0 0.0
        %1094 = vmatmul.mubr.f32.gmra.mxu0 %v908
        %v1095 = vpop.f32.mrf.mxu0
        %v1096 = vadd.f32 0.0, %v1095
        %v1097 = vpop.f32.mrf.mxu0
        %1098 = vmatprep.mubr.f32.mxu0 0.0
        %1099 = vmatmul.mubr.f32.gmra.mxu0 %v911
        %v1100 = vpop.f32.mrf.mxu0
        %v1101 = vadd.f32 0.0, %v1100
        %v1102 = vpop.f32.mrf.mxu0
        %1103 = vmatprep.mubr.f32.mxu0 0.0
        %1104 = vmatmul.mubr.f32.gmra.mxu0 %v914
        %v1105 = vpop.f32.mrf.mxu0
        %v1106 = vadd.f32 0.0, %v1105
        %v1107 = vpop.f32.mrf.mxu0
        %1108 = vmatprep.mubr.f32.mxu0 0.0
        %1109 = vmatmul.mubr.f32.gmra.mxu0 %v917
        %v1110 = vpop.f32.mrf.mxu0
        %v1111 = vadd.f32 0.0, %v1110
        %v1112 = vpop.f32.mrf.mxu0
        %1113 = vmatprep.mubr.f32.mxu0 0.0
        %1114 = vmatmul.mubr.f32.gmra.mxu0 %v920
        %v1115 = vpop.f32.mrf.mxu0
        %v1116 = vadd.f32 0.0, %v1115
        %v1117 = vpop.f32.mrf.mxu0
        %1118 = vmatprep.mubr.f32.mxu0 0.0
        %1119 = vmatmul.mubr.f32.gmra.mxu0 %v923
        %v1120 = vpop.f32.mrf.mxu0
        %v1121 = vadd.f32 0.0, %v1120
        %v1122 = vpop.f32.mrf.mxu0
        %1123 = vmatprep.mubr.f32.mxu0 0.0
        %1124 = vmatmul.mubr.f32.gmra.mxu0 %v926
        %v1125 = vpop.f32.mrf.mxu0
        %v1126 = vadd.f32 0.0, %v1125
        %v1127 = vpop.f32.mrf.mxu0
        %1128 = vmatprep.mubr.f32.mxu0 0.0
        %1129 = vmatmul.mubr.f32.gmra.mxu0 %v929
        %v1130 = vpop.f32.mrf.mxu0
        %v1131 = vadd.f32 0.0, %v1130
        %v1132 = vpop.f32.mrf.mxu0
        %1133 = vmatprep.mubr.f32.mxu0 0.0
        %1134 = vmatmul.mubr.f32.gmra.mxu0 %v932
        %v1135 = vpop.f32.mrf.mxu0
        %v1136 = vadd.f32 0.0, %v1135
        %v1137 = vpop.f32.mrf.mxu0
        %1138 = vmatprep.mubr.f32.mxu0 0.0
        %1139 = vmatmul.mubr.f32.gmra.mxu0 %v935
        %v1140 = vpop.f32.mrf.mxu0
        %v1141 = vadd.f32 0.0, %v1140
        %v1142 = vpop.f32.mrf.mxu0
        %1143 = vmatprep.mubr.f32.mxu0 0.0
        %1144 = vmatmul.mubr.f32.gmra.mxu0 %v938
        %v1145 = vpop.f32.mrf.mxu0
        %v1146 = vadd.f32 0.0, %v1145
        %v1147 = vpop.f32.mrf.mxu0
        %1148 = vmatprep.mubr.f32.mxu0 0.0
        %1149 = vmatmul.mubr.f32.gmra.mxu0 %v941
        %v1150 = vpop.f32.mrf.mxu0
        %v1151 = vadd.f32 0.0, %v1150
        %v1152 = vpop.f32.mrf.mxu0
        %1153 = vmatprep.mubr.f32.mxu0 0.0
        %1154 = vmatmul.mubr.f32.gmra.mxu0 %v944
        %v1155 = vpop.f32.mrf.mxu0
        %v1156 = vadd.f32 0.0, %v1155
        %v1157 = vpop.f32.mrf.mxu0
        %1158 = vmatprep.mubr.f32.mxu0 0.0
        %1159 = vmatmul.mubr.f32.gmra.mxu0 %v947
        %v1160 = vpop.f32.mrf.mxu0
        %v1161 = vadd.f32 0.0, %v1160
        %v1162 = vpop.f32.mrf.mxu0
        %1163 = vmatprep.mubr.f32.mxu0 0.0
        %1164 = vmatmul.mubr.f32.gmra.mxu0 %v950
        %v1165 = vpop.f32.mrf.mxu0
        %v1166 = vadd.f32 0.0, %v1165
        %v1167 = vpop.f32.mrf.mxu0
        %1168 = vmatprep.mubr.f32.mxu0 0.0
        %1169 = vmatmul.mubr.f32.gmra.mxu0 %v953
        %v1170 = vpop.f32.mrf.mxu0
        %v1171 = vadd.f32 0.0, %v1170
        %v1172 = vpop.f32.mrf.mxu0
        %1173 = vmatprep.mubr.f32.mxu0 0.0
        %1174 = vmatmul.mubr.f32.gmra.mxu0 %v956
        %v1175 = vpop.f32.mrf.mxu0
        %v1176 = vadd.f32 0.0, %v1175
        %v1177 = vpop.f32.mrf.mxu0
        %1178 = vmatprep.mubr.f32.mxu0 0.0
        %1179 = vmatmul.mubr.f32.gmra.mxu0 %v959
        %v1180 = vpop.f32.mrf.mxu0
        %v1181 = vadd.f32 0.0, %v1180
        %v1182 = vpop.f32.mrf.mxu0
        %1183 = vmatprep.mubr.f32.mxu0 0.0
        %1184 = vmatmul.mubr.f32.gmra.mxu0 %v962
        %v1185 = vpop.f32.mrf.mxu0
        %v1186 = vadd.f32 0.0, %v1185
        %v1187 = vpop.f32.mrf.mxu0
        %1188 = vmatprep.mubr.f32.mxu0 0.0
        %1189 = vmatmul.mubr.f32.gmra.mxu0 %v965
        %v1190 = vpop.f32.mrf.mxu0
        %v1191 = vadd.f32 0.0, %v1190
        %v1192 = vpop.f32.mrf.mxu0
        %1193 = vmatprep.mubr.f32.mxu0 0.0
        %1194 = vmatmul.mubr.f32.gmra.mxu0 %v968
        %v1195 = vpop.f32.mrf.mxu0
        %v1196 = vadd.f32 0.0, %v1195
        %v1197 = vpop.f32.mrf.mxu0
        %1198 = vmatprep.mubr.f32.mxu0 0.0
        %1199 = vmatmul.mubr.f32.gmra.mxu0 %v971
        %v1200 = vpop.f32.mrf.mxu0
        %v1201 = vadd.f32 0.0, %v1200
        %v1202 = vpop.f32.mrf.mxu0
        %1203 = vmatprep.mubr.f32.mxu0 0.0
        %1204 = vmatmul.mubr.f32.gmra.mxu0 %v974
        %v1205 = vpop.f32.mrf.mxu0
        %v1206 = vadd.f32 0.0, %v1205
        %v1207 = vpop.f32.mrf.mxu0
        %1208 = vmatprep.mubr.f32.mxu0 0.0
        %1209 = vmatmul.mubr.f32.gmra.mxu0 %v977
        %v1210 = vpop.f32.mrf.mxu0
        %v1211 = vadd.f32 0.0, %v1210
        %v1212 = vpop.f32.mrf.mxu0
        %1213 = vmatprep.mubr.f32.mxu0 0.0
        %1214 = vmatmul.mubr.f32.gmra.mxu0 %v980
        %v1215 = vpop.f32.mrf.mxu0
        %v1216 = vadd.f32 0.0, %v1215
        %v1217 = vpop.f32.mrf.mxu0
        %1218 = vmatprep.mubr.f32.mxu0 0.0
        %1219 = vmatmul.mubr.f32.gmra.mxu0 %v983
        %v1220 = vpop.f32.mrf.mxu0
        %v1221 = vadd.f32 0.0, %v1220
        %v1222 = vpop.f32.mrf.mxu0
        %1223 = vmatprep.mubr.f32.mxu0 0.0
        %1224 = vmatmul.mubr.f32.gmra.mxu0 %v986
        %v1225 = vpop.f32.mrf.mxu0
        %v1226 = vadd.f32 0.0, %v1225
        %v1227 = vpop.f32.mrf.mxu0
        %1228 = vmatprep.mubr.f32.mxu0 0.0
        %1229 = vmatmul.mubr.f32.gmra.mxu0 %v989
        %v1230 = vpop.f32.mrf.mxu0
        %v1231 = vadd.f32 0.0, %v1230
        %v1232 = vpop.f32.mrf.mxu0
        %1233 = vmatprep.mubr.f32.mxu0 0.0
        %1234 = vmatmul.mubr.f32.gmra.mxu0 %v992
        %v1235 = vpop.f32.mrf.mxu0
        %v1236 = vadd.f32 0.0, %v1235
        %v1237 = vpop.f32.mrf.mxu0
        %1238 = vmatprep.mubr.f32.mxu0 0.0
        %1239 = vmatmul.mubr.f32.gmra.mxu0 %v995
        %v1240 = vpop.f32.mrf.mxu0
        %v1241 = vadd.f32 0.0, %v1240
        %v1242 = vpop.f32.mrf.mxu0
        %1243 = vmatprep.mubr.f32.mxu0 0.0
        %1244 = vmatmul.mubr.f32.gmra.mxu0 %v998
        %v1245 = vpop.f32.mrf.mxu0
        %v1246 = vadd.f32 0.0, %v1245
        %v1247 = vpop.f32.mrf.mxu0
        %1248 = vdwg.mxu0
        %vm1249 = vcmask 523264
        %v1250 = vsel %vm1249, %v1091, -inf
        %1251 = vmax.xlane.f32.xlu0 %v1250
        %v1252 = vpop.xlane.xlu0 %1251
        %v1253 = vsel %vm1249, %v1096, -inf
        %1254 = vmax.xlane.f32.xlu0 %v1253
        %v1255 = vpop.xlane.xlu0 %1254
        %v1256 = vsel %vm1249, %v1101, -inf
        %1257 = vmax.xlane.f32.xlu0 %v1256
        %v1258 = vpop.xlane.xlu0 %1257
        %v1259 = vsel %vm1249, %v1106, -inf
        %1260 = vmax.xlane.f32.xlu0 %v1259
        %v1261 = vpop.xlane.xlu0 %1260
        %v1262 = vsel %vm1249, %v1111, -inf
        %1263 = vmax.xlane.f32.xlu0 %v1262
        %v1264 = vpop.xlane.xlu0 %1263
        %v1265 = vsel %vm1249, %v1116, -inf
        %1266 = vmax.xlane.f32.xlu0 %v1265
        %v1267 = vpop.xlane.xlu0 %1266
        %v1268 = vsel %vm1249, %v1121, -inf
        %1269 = vmax.xlane.f32.xlu0 %v1268
        %v1270 = vpop.xlane.xlu0 %1269
        %v1271 = vsel %vm1249, %v1126, -inf
        %1272 = vmax.xlane.f32.xlu0 %v1271
        %v1273 = vpop.xlane.xlu0 %1272
        %v1274 = vsel %vm1249, %v1131, -inf
        %1275 = vmax.xlane.f32.xlu0 %v1274
        %v1276 = vpop.xlane.xlu0 %1275
        %v1277 = vsel %vm1249, %v1136, -inf
        %1278 = vmax.xlane.f32.xlu0 %v1277
        %v1279 = vpop.xlane.xlu0 %1278
        %v1280 = vsel %vm1249, %v1141, -inf
        %1281 = vmax.xlane.f32.xlu0 %v1280
        %v1282 = vpop.xlane.xlu0 %1281
        %v1283 = vsel %vm1249, %v1146, -inf
        %1284 = vmax.xlane.f32.xlu0 %v1283
        %v1285 = vpop.xlane.xlu0 %1284
        %v1286 = vsel %vm1249, %v1151, -inf
        %1287 = vmax.xlane.f32.xlu0 %v1286
        %v1288 = vpop.xlane.xlu0 %1287
        %v1289 = vsel %vm1249, %v1156, -inf
        %1290 = vmax.xlane.f32.xlu0 %v1289
        %v1291 = vpop.xlane.xlu0 %1290
        %v1292 = vsel %vm1249, %v1161, -inf
        %1293 = vmax.xlane.f32.xlu0 %v1292
        %v1294 = vpop.xlane.xlu0 %1293
        %v1295 = vsel %vm1249, %v1166, -inf
        %1296 = vmax.xlane.f32.xlu0 %v1295
        %v1297 = vpop.xlane.xlu0 %1296
        %v1298 = vsel %vm1249, %v1171, -inf
        %1299 = vmax.xlane.f32.xlu0 %v1298
        %v1300 = vpop.xlane.xlu0 %1299
        %v1301 = vsel %vm1249, %v1176, -inf
        %1302 = vmax.xlane.f32.xlu0 %v1301
        %v1303 = vpop.xlane.xlu0 %1302
        %v1304 = vsel %vm1249, %v1181, -inf
        %1305 = vmax.xlane.f32.xlu0 %v1304
        %v1306 = vpop.xlane.xlu0 %1305
        %v1307 = vsel %vm1249, %v1186, -inf
        %1308 = vmax.xlane.f32.xlu0 %v1307
        %v1309 = vpop.xlane.xlu0 %1308
        %v1310 = vsel %vm1249, %v1191, -inf
        %1311 = vmax.xlane.f32.xlu0 %v1310
        %v1312 = vpop.xlane.xlu0 %1311
        %v1313 = vsel %vm1249, %v1196, -inf
        %1314 = vmax.xlane.f32.xlu0 %v1313
        %v1315 = vpop.xlane.xlu0 %1314
        %v1316 = vsel %vm1249, %v1201, -inf
        %1317 = vmax.xlane.f32.xlu0 %v1316
        %v1318 = vpop.xlane.xlu0 %1317
        %v1319 = vsel %vm1249, %v1206, -inf
        %1320 = vmax.xlane.f32.xlu0 %v1319
        %v1321 = vpop.xlane.xlu0 %1320
        %v1322 = vsel %vm1249, %v1211, -inf
        %1323 = vmax.xlane.f32.xlu0 %v1322
        %v1324 = vpop.xlane.xlu0 %1323
        %v1325 = vsel %vm1249, %v1216, -inf
        %1326 = vmax.xlane.f32.xlu0 %v1325
        %v1327 = vpop.xlane.xlu0 %1326
        %v1328 = vsel %vm1249, %v1221, -inf
        %1329 = vmax.xlane.f32.xlu0 %v1328
        %v1330 = vpop.xlane.xlu0 %1329
        %v1331 = vsel %vm1249, %v1226, -inf
        %1332 = vmax.xlane.f32.xlu0 %v1331
        %v1333 = vpop.xlane.xlu0 %1332
        %v1334 = vsel %vm1249, %v1231, -inf
        %1335 = vmax.xlane.f32.xlu0 %v1334
        %v1336 = vpop.xlane.xlu0 %1335
        %v1337 = vsel %vm1249, %v1236, -inf
        %1338 = vmax.xlane.f32.xlu0 %v1337
        %v1339 = vpop.xlane.xlu0 %1338
        %v1340 = vsel %vm1249, %v1241, -inf
        %1341 = vmax.xlane.f32.xlu0 %v1340
        %v1342 = vpop.xlane.xlu0 %1341
        %v1343 = vsel %vm1249, %v1246, -inf
        %1344 = vmax.xlane.f32.xlu0 %v1343
        %v1345 = vpop.xlane.xlu0 %1344
        %v1346 = vsub.f32 %v1091, %v1252
        %v1347 = vsub.f32 %v1096, %v1255
        %v1348 = vsub.f32 %v1101, %v1258
        %v1349 = vsub.f32 %v1106, %v1261
        %v1350 = vsub.f32 %v1111, %v1264
        %v1351 = vsub.f32 %v1116, %v1267
        %v1352 = vsub.f32 %v1121, %v1270
        %v1353 = vsub.f32 %v1126, %v1273
        %v1354 = vsub.f32 %v1131, %v1276
        %v1355 = vsub.f32 %v1136, %v1279
        %v1356 = vsub.f32 %v1141, %v1282
        %v1357 = vsub.f32 %v1146, %v1285
        %v1358 = vsub.f32 %v1151, %v1288
        %v1359 = vsub.f32 %v1156, %v1291
        %v1360 = vsub.f32 %v1161, %v1294
        %v1361 = vsub.f32 %v1166, %v1297
        %v1362 = vsub.f32 %v1171, %v1300
        %v1363 = vsub.f32 %v1176, %v1303
        %v1364 = vsub.f32 %v1181, %v1306
        %v1365 = vsub.f32 %v1186, %v1309
        %v1366 = vsub.f32 %v1191, %v1312
        %v1367 = vsub.f32 %v1196, %v1315
        %v1368 = vsub.f32 %v1201, %v1318
        %v1369 = vsub.f32 %v1206, %v1321
        %v1370 = vsub.f32 %v1211, %v1324
        %v1371 = vsub.f32 %v1216, %v1327
        %v1372 = vsub.f32 %v1221, %v1330
        %v1373 = vsub.f32 %v1226, %v1333
        %v1374 = vsub.f32 %v1231, %v1336
        %v1375 = vsub.f32 %v1236, %v1339
        %v1376 = vsub.f32 %v1241, %v1342
        %v1377 = vsub.f32 %v1246, %v1345
        %v1378 = vmul.f32 %v1346, 1.442695
        %v1379 = vpow.pop %v1378
        %v1380 = vmul.f32 %v1347, 1.442695
        %v1381 = vpow.pop %v1380
        %v1382 = vmul.f32 %v1348, 1.442695
        %v1383 = vpow.pop %v1382
        %v1384 = vmul.f32 %v1349, 1.442695
        %v1385 = vpow.pop %v1384
        %v1386 = vmul.f32 %v1350, 1.442695
        %v1387 = vpow.pop %v1386
        %v1388 = vmul.f32 %v1351, 1.442695
        %v1389 = vpow.pop %v1388
        %v1390 = vmul.f32 %v1352, 1.442695
        %v1391 = vpow.pop %v1390
        %v1392 = vmul.f32 %v1353, 1.442695
        %v1393 = vpow.pop %v1392
        %v1394 = vmul.f32 %v1354, 1.442695
        %v1395 = vpow.pop %v1394
        %v1396 = vmul.f32 %v1355, 1.442695
        %v1397 = vpow.pop %v1396
        %v1398 = vmul.f32 %v1356, 1.442695
        %v1399 = vpow.pop %v1398
        %v1400 = vmul.f32 %v1357, 1.442695
        %v1401 = vpow.pop %v1400
        %v1402 = vmul.f32 %v1358, 1.442695
        %v1403 = vpow.pop %v1402
        %v1404 = vmul.f32 %v1359, 1.442695
        %v1405 = vpow.pop %v1404
        %v1406 = vmul.f32 %v1360, 1.442695
        %v1407 = vpow.pop %v1406
        %v1408 = vmul.f32 %v1361, 1.442695
        %v1409 = vpow.pop %v1408
        %v1410 = vmul.f32 %v1362, 1.442695
        %v1411 = vpow.pop %v1410
        %v1412 = vmul.f32 %v1363, 1.442695
        %v1413 = vpow.pop %v1412
        %v1414 = vmul.f32 %v1364, 1.442695
        %v1415 = vpow.pop %v1414
        %v1416 = vmul.f32 %v1365, 1.442695
        %v1417 = vpow.pop %v1416
        %v1418 = vmul.f32 %v1366, 1.442695
        %v1419 = vpow.pop %v1418
        %v1420 = vmul.f32 %v1367, 1.442695
        %v1421 = vpow.pop %v1420
        %v1422 = vmul.f32 %v1368, 1.442695
        %v1423 = vpow.pop %v1422
        %v1424 = vmul.f32 %v1369, 1.442695
        %v1425 = vpow.pop %v1424
        %v1426 = vmul.f32 %v1370, 1.442695
        %v1427 = vpow.pop %v1426
        %v1428 = vmul.f32 %v1371, 1.442695
        %v1429 = vpow.pop %v1428
        %v1430 = vmul.f32 %v1372, 1.442695
        %v1431 = vpow.pop %v1430
        %v1432 = vmul.f32 %v1373, 1.442695
        %v1433 = vpow.pop %v1432
        %v1434 = vmul.f32 %v1374, 1.442695
        %v1435 = vpow.pop %v1434
        %v1436 = vmul.f32 %v1375, 1.442695
        %v1437 = vpow.pop %v1436
        %v1438 = vmul.f32 %v1376, 1.442695
        %v1439 = vpow.pop %v1438
        %v1440 = vmul.f32 %v1377, 1.442695
        %v1441 = vpow.pop %v1440
        %v1442 = vsel %vm1249, %v1379, 0.0
        %1443 = vadd.xlane.f32.xlu0 %v1442
        %v1444 = vpop.xlane.xlu0 %1443
        %v1445 = vsel %vm1249, %v1381, 0.0
        %1446 = vadd.xlane.f32.xlu0 %v1445
        %v1447 = vpop.xlane.xlu0 %1446
        %v1448 = vsel %vm1249, %v1383, 0.0
        %1449 = vadd.xlane.f32.xlu0 %v1448
        %v1450 = vpop.xlane.xlu0 %1449
        %v1451 = vsel %vm1249, %v1385, 0.0
        %1452 = vadd.xlane.f32.xlu0 %v1451
        %v1453 = vpop.xlane.xlu0 %1452
        %v1454 = vsel %vm1249, %v1387, 0.0
        %1455 = vadd.xlane.f32.xlu0 %v1454
        %v1456 = vpop.xlane.xlu0 %1455
        %v1457 = vsel %vm1249, %v1389, 0.0
        %1458 = vadd.xlane.f32.xlu0 %v1457
        %v1459 = vpop.xlane.xlu0 %1458
        %v1460 = vsel %vm1249, %v1391, 0.0
        %1461 = vadd.xlane.f32.xlu0 %v1460
        %v1462 = vpop.xlane.xlu0 %1461
        %v1463 = vsel %vm1249, %v1393, 0.0
        %1464 = vadd.xlane.f32.xlu0 %v1463
        %v1465 = vpop.xlane.xlu0 %1464
        %v1466 = vsel %vm1249, %v1395, 0.0
        %1467 = vadd.xlane.f32.xlu0 %v1466
        %v1468 = vpop.xlane.xlu0 %1467
        %v1469 = vsel %vm1249, %v1397, 0.0
        %1470 = vadd.xlane.f32.xlu0 %v1469
        %v1471 = vpop.xlane.xlu0 %1470
        %v1472 = vsel %vm1249, %v1399, 0.0
        %1473 = vadd.xlane.f32.xlu0 %v1472
        %v1474 = vpop.xlane.xlu0 %1473
        %v1475 = vsel %vm1249, %v1401, 0.0
        %1476 = vadd.xlane.f32.xlu0 %v1475
        %v1477 = vpop.xlane.xlu0 %1476
        %v1478 = vsel %vm1249, %v1403, 0.0
        %1479 = vadd.xlane.f32.xlu0 %v1478
        %v1480 = vpop.xlane.xlu0 %1479
        %v1481 = vsel %vm1249, %v1405, 0.0
        %1482 = vadd.xlane.f32.xlu0 %v1481
        %v1483 = vpop.xlane.xlu0 %1482
        %v1484 = vsel %vm1249, %v1407, 0.0
        %1485 = vadd.xlane.f32.xlu0 %v1484
        %v1486 = vpop.xlane.xlu0 %1485
        %v1487 = vsel %vm1249, %v1409, 0.0
        %1488 = vadd.xlane.f32.xlu0 %v1487
        %v1489 = vpop.xlane.xlu0 %1488
        %v1490 = vsel %vm1249, %v1411, 0.0
        %1491 = vadd.xlane.f32.xlu0 %v1490
        %v1492 = vpop.xlane.xlu0 %1491
        %v1493 = vsel %vm1249, %v1413, 0.0
        %1494 = vadd.xlane.f32.xlu0 %v1493
        %v1495 = vpop.xlane.xlu0 %1494
        %v1496 = vsel %vm1249, %v1415, 0.0
        %1497 = vadd.xlane.f32.xlu0 %v1496
        %v1498 = vpop.xlane.xlu0 %1497
        %v1499 = vsel %vm1249, %v1417, 0.0
        %1500 = vadd.xlane.f32.xlu0 %v1499
        %v1501 = vpop.xlane.xlu0 %1500
        %v1502 = vsel %vm1249, %v1419, 0.0
        %1503 = vadd.xlane.f32.xlu0 %v1502
        %v1504 = vpop.xlane.xlu0 %1503
        %v1505 = vsel %vm1249, %v1421, 0.0
        %1506 = vadd.xlane.f32.xlu0 %v1505
        %v1507 = vpop.xlane.xlu0 %1506
        %v1508 = vsel %vm1249, %v1423, 0.0
        %1509 = vadd.xlane.f32.xlu0 %v1508
        %v1510 = vpop.xlane.xlu0 %1509
        %v1511 = vsel %vm1249, %v1425, 0.0
        %1512 = vadd.xlane.f32.xlu0 %v1511
        %v1513 = vpop.xlane.xlu0 %1512
        %v1514 = vsel %vm1249, %v1427, 0.0
        %1515 = vadd.xlane.f32.xlu0 %v1514
        %v1516 = vpop.xlane.xlu0 %1515
        %v1517 = vsel %vm1249, %v1429, 0.0
        %1518 = vadd.xlane.f32.xlu0 %v1517
        %v1519 = vpop.xlane.xlu0 %1518
        %v1520 = vsel %vm1249, %v1431, 0.0
        %1521 = vadd.xlane.f32.xlu0 %v1520
        %v1522 = vpop.xlane.xlu0 %1521
        %v1523 = vsel %vm1249, %v1433, 0.0
        %1524 = vadd.xlane.f32.xlu0 %v1523
        %v1525 = vpop.xlane.xlu0 %1524
        %v1526 = vsel %vm1249, %v1435, 0.0
        %1527 = vadd.xlane.f32.xlu0 %v1526
        %v1528 = vpop.xlane.xlu0 %1527
        %v1529 = vsel %vm1249, %v1437, 0.0
        %1530 = vadd.xlane.f32.xlu0 %v1529
        %v1531 = vpop.xlane.xlu0 %1530
        %v1532 = vsel %vm1249, %v1439, 0.0
        %1533 = vadd.xlane.f32.xlu0 %v1532
        %v1534 = vpop.xlane.xlu0 %1533
        %v1535 = vsel %vm1249, %v1441, 0.0
        %1536 = vadd.xlane.f32.xlu0 %v1535
        %v1537 = vpop.xlane.xlu0 %1536
        %1546 = vrot.lane.b32.xlu0 %v896, 96
        %v1547 = vpop.permute.xlu0 %1546
        %1548 = vrot.lane.b32.xlu0 %v897, 96
        %v1549 = vpop.permute.xlu0 %1548
        %1550 = vrot.lane.b32.xlu0 %v898, 96
        %v1551 = vpop.permute.xlu0 %1550
        %1552 = vrot.lane.b32.xlu0 %v899, 96
        %v1553 = vpop.permute.xlu0 %1552
        %1554 = vrot.lane.b32.xlu0 %v900, 96
        %v1555 = vpop.permute.xlu0 %1554
        %1556 = vrot.lane.b32.xlu0 %v901, 96
        %v1557 = vpop.permute.xlu0 %1556
        %1558 = vrot.lane.b32.xlu0 %v902, 96
        %v1559 = vpop.permute.xlu0 %1558
        %1560 = vrot.lane.b32.xlu0 %v903, 96
        %v1561 = vpop.permute.xlu0 %1560
        %v1571 = vsel %vm1249, %v1379, 0
        %v1574 = vsel %vm1249, %v1381, 0
        %v1577 = vsel %vm1249, %v1383, 0
        %v1580 = vsel %vm1249, %v1385, 0
        %v1583 = vsel %vm1249, %v1387, 0
        %v1586 = vsel %vm1249, %v1389, 0
        %v1589 = vsel %vm1249, %v1391, 0
        %v1592 = vsel %vm1249, %v1393, 0
        %v1595 = vsel %vm1249, %v1395, 0
        %v1598 = vsel %vm1249, %v1397, 0
        %v1601 = vsel %vm1249, %v1399, 0
        %v1604 = vsel %vm1249, %v1401, 0
        %v1607 = vsel %vm1249, %v1403, 0
        %v1610 = vsel %vm1249, %v1405, 0
        %v1613 = vsel %vm1249, %v1407, 0
        %v1616 = vsel %vm1249, %v1409, 0
        %v1619 = vsel %vm1249, %v1411, 0
        %v1622 = vsel %vm1249, %v1413, 0
        %v1625 = vsel %vm1249, %v1415, 0
        %v1628 = vsel %vm1249, %v1417, 0
        %v1631 = vsel %vm1249, %v1419, 0
        %v1634 = vsel %vm1249, %v1421, 0
        %v1637 = vsel %vm1249, %v1423, 0
        %v1640 = vsel %vm1249, %v1425, 0
        %v1643 = vsel %vm1249, %v1427, 0
        %v1646 = vsel %vm1249, %v1429, 0
        %v1649 = vsel %vm1249, %v1431, 0
        %v1652 = vsel %vm1249, %v1433, 0
        %v1655 = vsel %vm1249, %v1435, 0
        %v1658 = vsel %vm1249, %v1437, 0
        %v1661 = vsel %vm1249, %v1439, 0
        %v1664 = vsel %vm1249, %v1441, 0
        %1666 = vmatprep.subr.mxu0 0.0
        %1667 = vmatpush1.msra.mxu0 0.0
        %1668 = vmatprep.subr.mxu0 0.0
        %1669 = vmatpush1.msra.mxu0 0.0
        %1670 = vmatprep.subr.mxu0 0.0
        %1671 = vmatpush1.msra.mxu0 0.0
        %1672 = vmatprep.subr.mxu0 0.0
        %1673 = vmatpush1.msra.mxu0 0.0
        %1674 = vmatprep.subr.mxu0 0.0
        %1675 = vmatpush1.msra.mxu0 0.0
        %1676 = vmatprep.subr.mxu0 0.0
        %1677 = vmatpush1.msra.mxu0 0.0
        %1678 = vmatprep.subr.mxu0 0.0
        %1679 = vmatpush1.msra.mxu0 0.0
        %1680 = vmatprep.subr.mxu0 0.0
        %1681 = vmatpush1.msra.mxu0 0.0
        %1682 = vmatprep.subr.mxu0 0.0
        %1683 = vmatpush1.msra.mxu0 %v1561
        %1684 = vmatprep.subr.mxu0 0.0
        %1685 = vmatpush1.msra.mxu0 %v1559
        %1686 = vmatprep.subr.mxu0 0.0
        %1687 = vmatpush1.msra.mxu0 %v1557
        %1688 = vmatprep.subr.mxu0 0.0
        %1689 = vmatpush1.msra.mxu0 %v1555
        %1690 = vmatprep.subr.mxu0 0.0
        %1691 = vmatpush1.msra.mxu0 %v1553
        %1692 = vmatprep.subr.mxu0 0.0
        %1693 = vmatpush1.msra.mxu0 %v1551
        %1694 = vmatprep.subr.mxu0 0.0
        %1695 = vmatpush1.msra.mxu0 %v1549
        %1696 = vmatprep.subr.mxu0 0.0
        %1697 = vmatpush1.msra.mxu0 %v1547
        %1698 = vmatprep.subr.mxu0 0.0
        %1699 = vmatpush2.msra.mxu0 0.0
        %1700 = vmatprep.subr.mxu0 0.0
        %1701 = vmatpush2.msra.mxu0 0.0
        %1702 = vmatprep.subr.mxu0 0.0
        %1703 = vmatpush2.msra.mxu0 0.0
        %1704 = vmatprep.subr.mxu0 0.0
        %1705 = vmatpush2.msra.mxu0 0.0
        %1706 = vmatprep.subr.mxu0 0.0
        %1707 = vmatpush2.msra.mxu0 0.0
        %1708 = vmatprep.subr.mxu0 0.0
        %1709 = vmatpush2.msra.mxu0 0.0
        %1710 = vmatprep.subr.mxu0 0.0
        %1711 = vmatpush2.msra.mxu0 0.0
        %1712 = vmatprep.subr.mxu0 0.0
        %1713 = vmatpush2.msra.mxu0 0.0
        %1714 = vmatprep.subr.mxu0 0.0
        %1715 = vmatpush2.msra.mxu0 0.0
        %1716 = vmatprep.subr.mxu0 0.0
        %1717 = vmatpush2.msra.mxu0 0.0
        %1718 = vmatprep.subr.mxu0 0.0
        %1719 = vmatpush2.msra.mxu0 0.0
        %1720 = vmatprep.subr.mxu0 0.0
        %1721 = vmatpush2.msra.mxu0 0.0
        %1722 = vmatprep.subr.mxu0 0.0
        %1723 = vmatpush2.msra.mxu0 0.0
        %1724 = vmatprep.subr.mxu0 0.0
        %1725 = vmatpush2.msra.mxu0 0.0
        %1726 = vmatprep.subr.mxu0 0.0
        %1727 = vmatpush2.msra.mxu0 0.0
        %1728 = vmatprep.subr.mxu0 0.0
        %1729 = vmatpush2.msra.mxu0 0.0
        %1730 = vmatprep.mubr.f32.mxu0 0.0
        %1731 = vmatmul.mubr.f32.gmra.mxu0 %v1571
        %v1732 = vpop.f32.mrf.mxu0
        %v1733 = vadd.f32 0.0, %v1732
        %v1734 = vpop.f32.mrf.mxu0
        %1735 = vmatprep.mubr.f32.mxu0 0.0
        %1736 = vmatmul.mubr.f32.gmra.mxu0 %v1574
        %v1737 = vpop.f32.mrf.mxu0
        %v1738 = vadd.f32 0.0, %v1737
        %v1739 = vpop.f32.mrf.mxu0
        %1740 = vmatprep.mubr.f32.mxu0 0.0
        %1741 = vmatmul.mubr.f32.gmra.mxu0 %v1577
        %v1742 = vpop.f32.mrf.mxu0
        %v1743 = vadd.f32 0.0, %v1742
        %v1744 = vpop.f32.mrf.mxu0
        %1745 = vmatprep.mubr.f32.mxu0 0.0
        %1746 = vmatmul.mubr.f32.gmra.mxu0 %v1580
        %v1747 = vpop.f32.mrf.mxu0
        %v1748 = vadd.f32 0.0, %v1747
        %v1749 = vpop.f32.mrf.mxu0
        %1750 = vmatprep.mubr.f32.mxu0 0.0
        %1751 = vmatmul.mubr.f32.gmra.mxu0 %v1583
        %v1752 = vpop.f32.mrf.mxu0
        %v1753 = vadd.f32 0.0, %v1752
        %v1754 = vpop.f32.mrf.mxu0
        %1755 = vmatprep.mubr.f32.mxu0 0.0
        %1756 = vmatmul.mubr.f32.gmra.mxu0 %v1586
        %v1757 = vpop.f32.mrf.mxu0
        %v1758 = vadd.f32 0.0, %v1757
        %v1759 = vpop.f32.mrf.mxu0
        %1760 = vmatprep.mubr.f32.mxu0 0.0
        %1761 = vmatmul.mubr.f32.gmra.mxu0 %v1589
        %v1762 = vpop.f32.mrf.mxu0
        %v1763 = vadd.f32 0.0, %v1762
        %v1764 = vpop.f32.mrf.mxu0
        %1765 = vmatprep.mubr.f32.mxu0 0.0
        %1766 = vmatmul.mubr.f32.gmra.mxu0 %v1592
        %v1767 = vpop.f32.mrf.mxu0
        %v1768 = vadd.f32 0.0, %v1767
        %v1769 = vpop.f32.mrf.mxu0
        %1770 = vmatprep.mubr.f32.mxu0 0.0
        %1771 = vmatmul.mubr.f32.gmra.mxu0 %v1595
        %v1772 = vpop.f32.mrf.mxu0
        %v1773 = vadd.f32 0.0, %v1772
        %v1774 = vpop.f32.mrf.mxu0
        %1775 = vmatprep.mubr.f32.mxu0 0.0
        %1776 = vmatmul.mubr.f32.gmra.mxu0 %v1598
        %v1777 = vpop.f32.mrf.mxu0
        %v1778 = vadd.f32 0.0, %v1777
        %v1779 = vpop.f32.mrf.mxu0
        %1780 = vmatprep.mubr.f32.mxu0 0.0
        %1781 = vmatmul.mubr.f32.gmra.mxu0 %v1601
        %v1782 = vpop.f32.mrf.mxu0
        %v1783 = vadd.f32 0.0, %v1782
        %v1784 = vpop.f32.mrf.mxu0
        %1785 = vmatprep.mubr.f32.mxu0 0.0
        %1786 = vmatmul.mubr.f32.gmra.mxu0 %v1604
        %v1787 = vpop.f32.mrf.mxu0
        %v1788 = vadd.f32 0.0, %v1787
        %v1789 = vpop.f32.mrf.mxu0
        %1790 = vmatprep.mubr.f32.mxu0 0.0
        %1791 = vmatmul.mubr.f32.gmra.mxu0 %v1607
        %v1792 = vpop.f32.mrf.mxu0
        %v1793 = vadd.f32 0.0, %v1792
        %v1794 = vpop.f32.mrf.mxu0
        %1795 = vmatprep.mubr.f32.mxu0 0.0
        %1796 = vmatmul.mubr.f32.gmra.mxu0 %v1610
        %v1797 = vpop.f32.mrf.mxu0
        %v1798 = vadd.f32 0.0, %v1797
        %v1799 = vpop.f32.mrf.mxu0
        %1800 = vmatprep.mubr.f32.mxu0 0.0
        %1801 = vmatmul.mubr.f32.gmra.mxu0 %v1613
        %v1802 = vpop.f32.mrf.mxu0
        %v1803 = vadd.f32 0.0, %v1802
        %v1804 = vpop.f32.mrf.mxu0
        %1805 = vmatprep.mubr.f32.mxu0 0.0
        %1806 = vmatmul.mubr.f32.gmra.mxu0 %v1616
        %v1807 = vpop.f32.mrf.mxu0
        %v1808 = vadd.f32 0.0, %v1807
        %v1809 = vpop.f32.mrf.mxu0
        %1810 = vmatprep.mubr.f32.mxu0 0.0
        %1811 = vmatmul.mubr.f32.gmra.mxu0 %v1619
        %v1812 = vpop.f32.mrf.mxu0
        %v1813 = vadd.f32 0.0, %v1812
        %v1814 = vpop.f32.mrf.mxu0
        %1815 = vmatprep.mubr.f32.mxu0 0.0
        %1816 = vmatmul.mubr.f32.gmra.mxu0 %v1622
        %v1817 = vpop.f32.mrf.mxu0
        %v1818 = vadd.f32 0.0, %v1817
        %v1819 = vpop.f32.mrf.mxu0
        %1820 = vmatprep.mubr.f32.mxu0 0.0
        %1821 = vmatmul.mubr.f32.gmra.mxu0 %v1625
        %v1822 = vpop.f32.mrf.mxu0
        %v1823 = vadd.f32 0.0, %v1822
        %v1824 = vpop.f32.mrf.mxu0
        %1825 = vmatprep.mubr.f32.mxu0 0.0
        %1826 = vmatmul.mubr.f32.gmra.mxu0 %v1628
        %v1827 = vpop.f32.mrf.mxu0
        %v1828 = vadd.f32 0.0, %v1827
        %v1829 = vpop.f32.mrf.mxu0
        %1830 = vmatprep.mubr.f32.mxu0 0.0
        %1831 = vmatmul.mubr.f32.gmra.mxu0 %v1631
        %v1832 = vpop.f32.mrf.mxu0
        %v1833 = vadd.f32 0.0, %v1832
        %v1834 = vpop.f32.mrf.mxu0
        %1835 = vmatprep.mubr.f32.mxu0 0.0
        %1836 = vmatmul.mubr.f32.gmra.mxu0 %v1634
        %v1837 = vpop.f32.mrf.mxu0
        %v1838 = vadd.f32 0.0, %v1837
        %v1839 = vpop.f32.mrf.mxu0
        %1840 = vmatprep.mubr.f32.mxu0 0.0
        %1841 = vmatmul.mubr.f32.gmra.mxu0 %v1637
        %v1842 = vpop.f32.mrf.mxu0
        %v1843 = vadd.f32 0.0, %v1842
        %v1844 = vpop.f32.mrf.mxu0
        %1845 = vmatprep.mubr.f32.mxu0 0.0
        %1846 = vmatmul.mubr.f32.gmra.mxu0 %v1640
        %v1847 = vpop.f32.mrf.mxu0
        %v1848 = vadd.f32 0.0, %v1847
        %v1849 = vpop.f32.mrf.mxu0
        %1850 = vmatprep.mubr.f32.mxu0 0.0
        %1851 = vmatmul.mubr.f32.gmra.mxu0 %v1643
        %v1852 = vpop.f32.mrf.mxu0
        %v1853 = vadd.f32 0.0, %v1852
        %v1854 = vpop.f32.mrf.mxu0
        %1855 = vmatprep.mubr.f32.mxu0 0.0
        %1856 = vmatmul.mubr.f32.gmra.mxu0 %v1646
        %v1857 = vpop.f32.mrf.mxu0
        %v1858 = vadd.f32 0.0, %v1857
        %v1859 = vpop.f32.mrf.mxu0
        %1860 = vmatprep.mubr.f32.mxu0 0.0
        %1861 = vmatmul.mubr.f32.gmra.mxu0 %v1649
        %v1862 = vpop.f32.mrf.mxu0
        %v1863 = vadd.f32 0.0, %v1862
        %v1864 = vpop.f32.mrf.mxu0
        %1865 = vmatprep.mubr.f32.mxu0 0.0
        %1866 = vmatmul.mubr.f32.gmra.mxu0 %v1652
        %v1867 = vpop.f32.mrf.mxu0
        %v1868 = vadd.f32 0.0, %v1867
        %v1869 = vpop.f32.mrf.mxu0
        %1870 = vmatprep.mubr.f32.mxu0 0.0
        %1871 = vmatmul.mubr.f32.gmra.mxu0 %v1655
        %v1872 = vpop.f32.mrf.mxu0
        %v1873 = vadd.f32 0.0, %v1872
        %v1874 = vpop.f32.mrf.mxu0
        %1875 = vmatprep.mubr.f32.mxu0 0.0
        %1876 = vmatmul.mubr.f32.gmra.mxu0 %v1658
        %v1877 = vpop.f32.mrf.mxu0
        %v1878 = vadd.f32 0.0, %v1877
        %v1879 = vpop.f32.mrf.mxu0
        %1880 = vmatprep.mubr.f32.mxu0 0.0
        %1881 = vmatmul.mubr.f32.gmra.mxu0 %v1661
        %v1882 = vpop.f32.mrf.mxu0
        %v1883 = vadd.f32 0.0, %v1882
        %v1884 = vpop.f32.mrf.mxu0
        %1885 = vmatprep.mubr.f32.mxu0 0.0
        %1886 = vmatmul.mubr.f32.gmra.mxu0 %v1664
        %v1887 = vpop.f32.mrf.mxu0
        %v1888 = vadd.f32 0.0, %v1887
        %v1889 = vpop.f32.mrf.mxu0
        %1890 = vdwg.mxu0
        %v1891 = vrcp.pop %v1444
        %v1892 = vrcp.pop %v1447
        %v1893 = vrcp.pop %v1450
        %v1894 = vrcp.pop %v1453
        %v1895 = vrcp.pop %v1456
        %v1896 = vrcp.pop %v1459
        %v1897 = vrcp.pop %v1462
        %v1898 = vrcp.pop %v1465
        %v1899 = vrcp.pop %v1468
        %v1900 = vrcp.pop %v1471
        %v1901 = vrcp.pop %v1474
        %v1902 = vrcp.pop %v1477
        %v1903 = vrcp.pop %v1480
        %v1904 = vrcp.pop %v1483
        %v1905 = vrcp.pop %v1486
        %v1906 = vrcp.pop %v1489
        %v1907 = vrcp.pop %v1492
        %v1908 = vrcp.pop %v1495
        %v1909 = vrcp.pop %v1498
        %v1910 = vrcp.pop %v1501
        %v1911 = vrcp.pop %v1504
        %v1912 = vrcp.pop %v1507
        %v1913 = vrcp.pop %v1510
        %v1914 = vrcp.pop %v1513
        %v1915 = vrcp.pop %v1516
        %v1916 = vrcp.pop %v1519
        %v1917 = vrcp.pop %v1522
        %v1918 = vrcp.pop %v1525
        %v1919 = vrcp.pop %v1528
        %v1920 = vrcp.pop %v1531
        %v1921 = vrcp.pop %v1534
        %v1922 = vrcp.pop %v1537
        %v1923 = vmul.f32 %v1733, %v1891
        %v1924 = vmul.f32 %v1738, %v1892
        %v1925 = vmul.f32 %v1743, %v1893
        %v1926 = vmul.f32 %v1748, %v1894
        %v1927 = vmul.f32 %v1753, %v1895
        %v1928 = vmul.f32 %v1758, %v1896
        %v1929 = vmul.f32 %v1763, %v1897
        %v1930 = vmul.f32 %v1768, %v1898
        %v1931 = vmul.f32 %v1773, %v1899
        %v1932 = vmul.f32 %v1778, %v1900
        %v1933 = vmul.f32 %v1783, %v1901
        %v1934 = vmul.f32 %v1788, %v1902
        %v1935 = vmul.f32 %v1793, %v1903
        %v1936 = vmul.f32 %v1798, %v1904
        %v1937 = vmul.f32 %v1803, %v1905
        %v1938 = vmul.f32 %v1808, %v1906
        %v1939 = vmul.f32 %v1813, %v1907
        %v1940 = vmul.f32 %v1818, %v1908
        %v1941 = vmul.f32 %v1823, %v1909
        %v1942 = vmul.f32 %v1828, %v1910
        %v1943 = vmul.f32 %v1833, %v1911
        %v1944 = vmul.f32 %v1838, %v1912
        %v1945 = vmul.f32 %v1843, %v1913
        %v1946 = vmul.f32 %v1848, %v1914
        %v1947 = vmul.f32 %v1853, %v1915
        %v1948 = vmul.f32 %v1858, %v1916
        %v1949 = vmul.f32 %v1863, %v1917
        %v1950 = vmul.f32 %v1868, %v1918
        %v1951 = vmul.f32 %v1873, %v1919
        %v1952 = vmul.f32 %v1878, %v1920
        %v1953 = vmul.f32 %v1883, %v1921
        %v1954 = vmul.f32 %v1888, %v1922
        %v1955 = vld [vmem:[%s6] sm:$0xff]
        %v1956 = vld [vmem:[%s6 + $0x8] sm:$0xff]
        %v1957 = vld [vmem:[%s6 + $0x10] sm:$0xff]
        %v1958 = vld [vmem:[%s6 + $0x18] sm:$0xff]
        %v1959 = vld [vmem:[%s7] sm:$0xff]
        %v1960 = vld [vmem:[%s7 + $0x8] sm:$0xff]
        %v1961 = vld [vmem:[%s7 + $0x10] sm:$0xff]
        %v1962 = vld [vmem:[%s7 + $0x18] sm:$0xff]
        %1995 = vrot.lane.b32.xlu0 %v864, 96
        %v1996 = vpop.permute.xlu0 %1995
        %1997 = vrot.lane.b32.xlu0 %v865, 96
        %v1998 = vpop.permute.xlu0 %1997
        %1999 = vrot.lane.b32.xlu0 %v866, 96
        %v2000 = vpop.permute.xlu0 %1999
        %2001 = vrot.lane.b32.xlu0 %v867, 96
        %v2002 = vpop.permute.xlu0 %2001
        %2003 = vrot.lane.b32.xlu0 %v868, 96
        %v2004 = vpop.permute.xlu0 %2003
        %2005 = vrot.lane.b32.xlu0 %v869, 96
        %v2006 = vpop.permute.xlu0 %2005
        %2007 = vrot.lane.b32.xlu0 %v870, 96
        %v2008 = vpop.permute.xlu0 %2007
        %2009 = vrot.lane.b32.xlu0 %v871, 96
        %v2010 = vpop.permute.xlu0 %2009
        %2011 = vrot.lane.b32.xlu0 %v872, 96
        %v2012 = vpop.permute.xlu0 %2011
        %2013 = vrot.lane.b32.xlu0 %v873, 96
        %v2014 = vpop.permute.xlu0 %2013
        %2015 = vrot.lane.b32.xlu0 %v874, 96
        %v2016 = vpop.permute.xlu0 %2015
        %2017 = vrot.lane.b32.xlu0 %v875, 96
        %v2018 = vpop.permute.xlu0 %2017
        %2019 = vrot.lane.b32.xlu0 %v876, 96
        %v2020 = vpop.permute.xlu0 %2019
        %2021 = vrot.lane.b32.xlu0 %v877, 96
        %v2022 = vpop.permute.xlu0 %2021
        %2023 = vrot.lane.b32.xlu0 %v878, 96
        %v2024 = vpop.permute.xlu0 %2023
        %2025 = vrot.lane.b32.xlu0 %v879, 96
        %v2026 = vpop.permute.xlu0 %2025
        %2027 = vrot.lane.b32.xlu0 %v880, 96
        %v2028 = vpop.permute.xlu0 %2027
        %2029 = vrot.lane.b32.xlu0 %v881, 96
        %v2030 = vpop.permute.xlu0 %2029
        %2031 = vrot.lane.b32.xlu0 %v882, 96
        %v2032 = vpop.permute.xlu0 %2031
        %2033 = vrot.lane.b32.xlu0 %v883, 96
        %v2034 = vpop.permute.xlu0 %2033
        %2035 = vrot.lane.b32.xlu0 %v884, 96
        %v2036 = vpop.permute.xlu0 %2035
        %2037 = vrot.lane.b32.xlu0 %v885, 96
        %v2038 = vpop.permute.xlu0 %2037
        %2039 = vrot.lane.b32.xlu0 %v886, 96
        %v2040 = vpop.permute.xlu0 %2039
        %2041 = vrot.lane.b32.xlu0 %v887, 96
        %v2042 = vpop.permute.xlu0 %2041
        %2043 = vrot.lane.b32.xlu0 %v888, 96
        %v2044 = vpop.permute.xlu0 %2043
        %2045 = vrot.lane.b32.xlu0 %v889, 96
        %v2046 = vpop.permute.xlu0 %2045
        %2047 = vrot.lane.b32.xlu0 %v890, 96
        %v2048 = vpop.permute.xlu0 %2047
        %2049 = vrot.lane.b32.xlu0 %v891, 96
        %v2050 = vpop.permute.xlu0 %2049
        %2051 = vrot.lane.b32.xlu0 %v892, 96
        %v2052 = vpop.permute.xlu0 %2051
        %2053 = vrot.lane.b32.xlu0 %v893, 96
        %v2054 = vpop.permute.xlu0 %2053
        %2055 = vrot.lane.b32.xlu0 %v894, 96
        %v2056 = vpop.permute.xlu0 %2055
        %2057 = vrot.lane.b32.xlu0 %v895, 96
        %v2058 = vpop.permute.xlu0 %2057
        %v2059 = vsel %vm402, %v1996, 0
        %v2061 = vsel %vm402, %v1998, 0
        %v2063 = vsel %vm402, %v2000, 0
        %v2065 = vsel %vm402, %v2002, 0
        %v2067 = vsel %vm402, %v2004, 0
        %v2069 = vsel %vm402, %v2006, 0
        %v2071 = vsel %vm402, %v2008, 0
        %v2073 = vsel %vm402, %v2010, 0
        %v2075 = vsel %vm402, %v2012, 0
        %v2077 = vsel %vm402, %v2014, 0
        %v2079 = vsel %vm402, %v2016, 0
        %v2081 = vsel %vm402, %v2018, 0
        %v2083 = vsel %vm402, %v2020, 0
        %v2085 = vsel %vm402, %v2022, 0
        %v2087 = vsel %vm402, %v2024, 0
        %v2089 = vsel %vm402, %v2026, 0
        %v2091 = vsel %vm402, %v2028, 0
        %v2093 = vsel %vm402, %v2030, 0
        %v2095 = vsel %vm402, %v2032, 0
        %v2097 = vsel %vm402, %v2034, 0
        %v2099 = vsel %vm402, %v2036, 0
        %v2101 = vsel %vm402, %v2038, 0
        %v2103 = vsel %vm402, %v2040, 0
        %v2105 = vsel %vm402, %v2042, 0
        %v2107 = vsel %vm402, %v2044, 0
        %v2109 = vsel %vm402, %v2046, 0
        %v2111 = vsel %vm402, %v2048, 0
        %v2113 = vsel %vm402, %v2050, 0
        %v2115 = vsel %vm402, %v2052, 0
        %v2117 = vsel %vm402, %v2054, 0
        %v2119 = vsel %vm402, %v2056, 0
        %v2121 = vsel %vm402, %v2058, 0
        %2123 = vmatprep.subr.mxu0 0.0
        %2124 = vmatpush1.msra.mxu0 0.0
        %2125 = vmatprep.subr.mxu0 0.0
        %2126 = vmatpush1.msra.mxu0 0.0
        %2127 = vmatprep.subr.mxu0 0.0
        %2128 = vmatpush1.msra.mxu0 0.0
        %2129 = vmatprep.subr.mxu0 0.0
        %2130 = vmatpush1.msra.mxu0 0.0
        %2131 = vmatprep.subr.mxu0 0.0
        %2132 = vmatpush1.msra.mxu0 0.0
        %2133 = vmatprep.subr.mxu0 0.0
        %2134 = vmatpush1.msra.mxu0 0.0
        %2135 = vmatprep.subr.mxu0 0.0
        %2136 = vmatpush1.msra.mxu0 0.0
        %2137 = vmatprep.subr.mxu0 0.0
        %2138 = vmatpush1.msra.mxu0 0.0
        %2139 = vmatprep.subr.mxu0 0.0
        %2140 = vmatpush1.msra.mxu0 0.0
        %2141 = vmatprep.subr.mxu0 0.0
        %2142 = vmatpush1.msra.mxu0 0.0
        %2143 = vmatprep.subr.mxu0 0.0
        %2144 = vmatpush1.msra.mxu0 0.0
        %2145 = vmatprep.subr.mxu0 0.0
        %2146 = vmatpush1.msra.mxu0 0.0
        %2147 = vmatprep.subr.mxu0 0.0
        %2148 = vmatpush1.msra.mxu0 %v1962
        %2149 = vmatprep.subr.mxu0 0.0
        %2150 = vmatpush1.msra.mxu0 %v1961
        %2151 = vmatprep.subr.mxu0 0.0
        %2152 = vmatpush1.msra.mxu0 %v1960
        %2153 = vmatprep.subr.mxu0 0.0
        %2154 = vmatpush1.msra.mxu0 %v1959
        %2155 = vmatprep.subr.mxu0 0.0
        %2156 = vmatpush2.msra.mxu0 0.0
        %2157 = vmatprep.subr.mxu0 0.0
        %2158 = vmatpush2.msra.mxu0 0.0
        %2159 = vmatprep.subr.mxu0 0.0
        %2160 = vmatpush2.msra.mxu0 0.0
        %2161 = vmatprep.subr.mxu0 0.0
        %2162 = vmatpush2.msra.mxu0 0.0
        %2163 = vmatprep.subr.mxu0 0.0
        %2164 = vmatpush2.msra.mxu0 0.0
        %2165 = vmatprep.subr.mxu0 0.0
        %2166 = vmatpush2.msra.mxu0 0.0
        %2167 = vmatprep.subr.mxu0 0.0
        %2168 = vmatpush2.msra.mxu0 0.0
        %2169 = vmatprep.subr.mxu0 0.0
        %2170 = vmatpush2.msra.mxu0 0.0
        %2171 = vmatprep.subr.mxu0 0.0
        %2172 = vmatpush2.msra.mxu0 0.0
        %2173 = vmatprep.subr.mxu0 0.0
        %2174 = vmatpush2.msra.mxu0 0.0
        %2175 = vmatprep.subr.mxu0 0.0
        %2176 = vmatpush2.msra.mxu0 0.0
        %2177 = vmatprep.subr.mxu0 0.0
        %2178 = vmatpush2.msra.mxu0 0.0
        %2179 = vmatprep.subr.mxu0 0.0
        %2180 = vmatpush2.msra.mxu0 0.0
        %2181 = vmatprep.subr.mxu0 0.0
        %2182 = vmatpush2.msra.mxu0 0.0
        %2183 = vmatprep.subr.mxu0 0.0
        %2184 = vmatpush2.msra.mxu0 0.0
        %2185 = vmatprep.subr.mxu0 0.0
        %2186 = vmatpush2.msra.mxu0 0.0
        %2187 = vmatprep.mubr.f32.mxu0 0.0
        %2188 = vmatmul.mubr.f32.gmra.mxu0 %v2059
        %v2189 = vpop.f32.mrf.mxu0
        %v2190 = vadd.f32 0.0, %v2189
        %v2191 = vpop.f32.mrf.mxu0
        %2192 = vmatprep.mubr.f32.mxu0 0.0
        %2193 = vmatmul.mubr.f32.gmra.mxu0 %v2061
        %v2194 = vpop.f32.mrf.mxu0
        %v2195 = vadd.f32 0.0, %v2194
        %v2196 = vpop.f32.mrf.mxu0
        %2197 = vmatprep.mubr.f32.mxu0 0.0
        %2198 = vmatmul.mubr.f32.gmra.mxu0 %v2063
        %v2199 = vpop.f32.mrf.mxu0
        %v2200 = vadd.f32 0.0, %v2199
        %v2201 = vpop.f32.mrf.mxu0
        %2202 = vmatprep.mubr.f32.mxu0 0.0
        %2203 = vmatmul.mubr.f32.gmra.mxu0 %v2065
        %v2204 = vpop.f32.mrf.mxu0
        %v2205 = vadd.f32 0.0, %v2204
        %v2206 = vpop.f32.mrf.mxu0
        %2207 = vmatprep.mubr.f32.mxu0 0.0
        %2208 = vmatmul.mubr.f32.gmra.mxu0 %v2067
        %v2209 = vpop.f32.mrf.mxu0
        %v2210 = vadd.f32 0.0, %v2209
        %v2211 = vpop.f32.mrf.mxu0
        %2212 = vmatprep.mubr.f32.mxu0 0.0
        %2213 = vmatmul.mubr.f32.gmra.mxu0 %v2069
        %v2214 = vpop.f32.mrf.mxu0
        %v2215 = vadd.f32 0.0, %v2214
        %v2216 = vpop.f32.mrf.mxu0
        %2217 = vmatprep.mubr.f32.mxu0 0.0
        %2218 = vmatmul.mubr.f32.gmra.mxu0 %v2071
        %v2219 = vpop.f32.mrf.mxu0
        %v2220 = vadd.f32 0.0, %v2219
        %v2221 = vpop.f32.mrf.mxu0
        %2222 = vmatprep.mubr.f32.mxu0 0.0
        %2223 = vmatmul.mubr.f32.gmra.mxu0 %v2073
        %v2224 = vpop.f32.mrf.mxu0
        %v2225 = vadd.f32 0.0, %v2224
        %v2226 = vpop.f32.mrf.mxu0
        %2227 = vmatprep.mubr.f32.mxu0 0.0
        %2228 = vmatmul.mubr.f32.gmra.mxu0 %v2075
        %v2229 = vpop.f32.mrf.mxu0
        %v2230 = vadd.f32 0.0, %v2229
        %v2231 = vpop.f32.mrf.mxu0
        %2232 = vmatprep.mubr.f32.mxu0 0.0
        %2233 = vmatmul.mubr.f32.gmra.mxu0 %v2077
        %v2234 = vpop.f32.mrf.mxu0
        %v2235 = vadd.f32 0.0, %v2234
        %v2236 = vpop.f32.mrf.mxu0
        %2237 = vmatprep.mubr.f32.mxu0 0.0
        %2238 = vmatmul.mubr.f32.gmra.mxu0 %v2079
        %v2239 = vpop.f32.mrf.mxu0
        %v2240 = vadd.f32 0.0, %v2239
        %v2241 = vpop.f32.mrf.mxu0
        %2242 = vmatprep.mubr.f32.mxu0 0.0
        %2243 = vmatmul.mubr.f32.gmra.mxu0 %v2081
        %v2244 = vpop.f32.mrf.mxu0
        %v2245 = vadd.f32 0.0, %v2244
        %v2246 = vpop.f32.mrf.mxu0
        %2247 = vmatprep.mubr.f32.mxu0 0.0
        %2248 = vmatmul.mubr.f32.gmra.mxu0 %v2083
        %v2249 = vpop.f32.mrf.mxu0
        %v2250 = vadd.f32 0.0, %v2249
        %v2251 = vpop.f32.mrf.mxu0
        %2252 = vmatprep.mubr.f32.mxu0 0.0
        %2253 = vmatmul.mubr.f32.gmra.mxu0 %v2085
        %v2254 = vpop.f32.mrf.mxu0
        %v2255 = vadd.f32 0.0, %v2254
        %v2256 = vpop.f32.mrf.mxu0
        %2257 = vmatprep.mubr.f32.mxu0 0.0
        %2258 = vmatmul.mubr.f32.gmra.mxu0 %v2087
        %v2259 = vpop.f32.mrf.mxu0
        %v2260 = vadd.f32 0.0, %v2259
        %v2261 = vpop.f32.mrf.mxu0
        %2262 = vmatprep.mubr.f32.mxu0 0.0
        %2263 = vmatmul.mubr.f32.gmra.mxu0 %v2089
        %v2264 = vpop.f32.mrf.mxu0
        %v2265 = vadd.f32 0.0, %v2264
        %v2266 = vpop.f32.mrf.mxu0
        %2267 = vmatprep.mubr.f32.mxu0 0.0
        %2268 = vmatmul.mubr.f32.gmra.mxu0 %v2091
        %v2269 = vpop.f32.mrf.mxu0
        %v2270 = vadd.f32 0.0, %v2269
        %v2271 = vpop.f32.mrf.mxu0
        %2272 = vmatprep.mubr.f32.mxu0 0.0
        %2273 = vmatmul.mubr.f32.gmra.mxu0 %v2093
        %v2274 = vpop.f32.mrf.mxu0
        %v2275 = vadd.f32 0.0, %v2274
        %v2276 = vpop.f32.mrf.mxu0
        %2277 = vmatprep.mubr.f32.mxu0 0.0
        %2278 = vmatmul.mubr.f32.gmra.mxu0 %v2095
        %v2279 = vpop.f32.mrf.mxu0
        %v2280 = vadd.f32 0.0, %v2279
        %v2281 = vpop.f32.mrf.mxu0
        %2282 = vmatprep.mubr.f32.mxu0 0.0
        %2283 = vmatmul.mubr.f32.gmra.mxu0 %v2097
        %v2284 = vpop.f32.mrf.mxu0
        %v2285 = vadd.f32 0.0, %v2284
        %v2286 = vpop.f32.mrf.mxu0
        %2287 = vmatprep.mubr.f32.mxu0 0.0
        %2288 = vmatmul.mubr.f32.gmra.mxu0 %v2099
        %v2289 = vpop.f32.mrf.mxu0
        %v2290 = vadd.f32 0.0, %v2289
        %v2291 = vpop.f32.mrf.mxu0
        %2292 = vmatprep.mubr.f32.mxu0 0.0
        %2293 = vmatmul.mubr.f32.gmra.mxu0 %v2101
        %v2294 = vpop.f32.mrf.mxu0
        %v2295 = vadd.f32 0.0, %v2294
        %v2296 = vpop.f32.mrf.mxu0
        %2297 = vmatprep.mubr.f32.mxu0 0.0
        %2298 = vmatmul.mubr.f32.gmra.mxu0 %v2103
        %v2299 = vpop.f32.mrf.mxu0
        %v2300 = vadd.f32 0.0, %v2299
        %v2301 = vpop.f32.mrf.mxu0
        %2302 = vmatprep.mubr.f32.mxu0 0.0
        %2303 = vmatmul.mubr.f32.gmra.mxu0 %v2105
        %v2304 = vpop.f32.mrf.mxu0
        %v2305 = vadd.f32 0.0, %v2304
        %v2306 = vpop.f32.mrf.mxu0
        %2307 = vmatprep.mubr.f32.mxu0 0.0
        %2308 = vmatmul.mubr.f32.gmra.mxu0 %v2107
        %v2309 = vpop.f32.mrf.mxu0
        %v2310 = vadd.f32 0.0, %v2309
        %v2311 = vpop.f32.mrf.mxu0
        %2312 = vmatprep.mubr.f32.mxu0 0.0
        %2313 = vmatmul.mubr.f32.gmra.mxu0 %v2109
        %v2314 = vpop.f32.mrf.mxu0
        %v2315 = vadd.f32 0.0, %v2314
        %v2316 = vpop.f32.mrf.mxu0
        %2317 = vmatprep.mubr.f32.mxu0 0.0
        %2318 = vmatmul.mubr.f32.gmra.mxu0 %v2111
        %v2319 = vpop.f32.mrf.mxu0
        %v2320 = vadd.f32 0.0, %v2319
        %v2321 = vpop.f32.mrf.mxu0
        %2322 = vmatprep.mubr.f32.mxu0 0.0
        %2323 = vmatmul.mubr.f32.gmra.mxu0 %v2113
        %v2324 = vpop.f32.mrf.mxu0
        %v2325 = vadd.f32 0.0, %v2324
        %v2326 = vpop.f32.mrf.mxu0
        %2327 = vmatprep.mubr.f32.mxu0 0.0
        %2328 = vmatmul.mubr.f32.gmra.mxu0 %v2115
        %v2329 = vpop.f32.mrf.mxu0
        %v2330 = vadd.f32 0.0, %v2329
        %v2331 = vpop.f32.mrf.mxu0
        %2332 = vmatprep.mubr.f32.mxu0 0.0
        %2333 = vmatmul.mubr.f32.gmra.mxu0 %v2117
        %v2334 = vpop.f32.mrf.mxu0
        %v2335 = vadd.f32 0.0, %v2334
        %v2336 = vpop.f32.mrf.mxu0
        %2337 = vmatprep.mubr.f32.mxu0 0.0
        %2338 = vmatmul.mubr.f32.gmra.mxu0 %v2119
        %v2339 = vpop.f32.mrf.mxu0
        %v2340 = vadd.f32 0.0, %v2339
        %v2341 = vpop.f32.mrf.mxu0
        %2342 = vmatprep.mubr.f32.mxu0 0.0
        %2343 = vmatmul.mubr.f32.gmra.mxu0 %v2121
        %v2344 = vpop.f32.mrf.mxu0
        %v2345 = vadd.f32 0.0, %v2344
        %v2346 = vpop.f32.mrf.mxu0
        %2347 = vdwg.mxu0
        %v2349 = vsel %vm402, %v1923, 0
        %v2352 = vsel %vm402, %v1924, 0
        %v2355 = vsel %vm402, %v1925, 0
        %v2358 = vsel %vm402, %v1926, 0
        %v2361 = vsel %vm402, %v1927, 0
        %v2364 = vsel %vm402, %v1928, 0
        %v2367 = vsel %vm402, %v1929, 0
        %v2370 = vsel %vm402, %v1930, 0
        %v2373 = vsel %vm402, %v1931, 0
        %v2376 = vsel %vm402, %v1932, 0
        %v2379 = vsel %vm402, %v1933, 0
        %v2382 = vsel %vm402, %v1934, 0
        %v2385 = vsel %vm402, %v1935, 0
        %v2388 = vsel %vm402, %v1936, 0
        %v2391 = vsel %vm402, %v1937, 0
        %v2394 = vsel %vm402, %v1938, 0
        %v2397 = vsel %vm402, %v1939, 0
        %v2400 = vsel %vm402, %v1940, 0
        %v2403 = vsel %vm402, %v1941, 0
        %v2406 = vsel %vm402, %v1942, 0
        %v2409 = vsel %vm402, %v1943, 0
        %v2412 = vsel %vm402, %v1944, 0
        %v2415 = vsel %vm402, %v1945, 0
        %v2418 = vsel %vm402, %v1946, 0
        %v2421 = vsel %vm402, %v1947, 0
        %v2424 = vsel %vm402, %v1948, 0
        %v2427 = vsel %vm402, %v1949, 0
        %v2430 = vsel %vm402, %v1950, 0
        %v2433 = vsel %vm402, %v1951, 0
        %v2436 = vsel %vm402, %v1952, 0
        %v2439 = vsel %vm402, %v1953, 0
        %v2442 = vsel %vm402, %v1954, 0
        %2444 = vmatprep.subr.mxu0 0.0
        %2445 = vmatpush1.msra.mxu0 0.0
        %2446 = vmatprep.subr.mxu0 0.0
        %2447 = vmatpush1.msra.mxu0 0.0
        %2448 = vmatprep.subr.mxu0 0.0
        %2449 = vmatpush1.msra.mxu0 0.0
        %2450 = vmatprep.subr.mxu0 0.0
        %2451 = vmatpush1.msra.mxu0 0.0
        %2452 = vmatprep.subr.mxu0 0.0
        %2453 = vmatpush1.msra.mxu0 0.0
        %2454 = vmatprep.subr.mxu0 0.0
        %2455 = vmatpush1.msra.mxu0 0.0
        %2456 = vmatprep.subr.mxu0 0.0
        %2457 = vmatpush1.msra.mxu0 0.0
        %2458 = vmatprep.subr.mxu0 0.0
        %2459 = vmatpush1.msra.mxu0 0.0
        %2460 = vmatprep.subr.mxu0 0.0
        %2461 = vmatpush1.msra.mxu0 0.0
        %2462 = vmatprep.subr.mxu0 0.0
        %2463 = vmatpush1.msra.mxu0 0.0
        %2464 = vmatprep.subr.mxu0 0.0
        %2465 = vmatpush1.msra.mxu0 0.0
        %2466 = vmatprep.subr.mxu0 0.0
        %2467 = vmatpush1.msra.mxu0 0.0
        %2468 = vmatprep.subr.mxu0 0.0
        %2469 = vmatpush1.msra.mxu0 %v1958
        %2470 = vmatprep.subr.mxu0 0.0
        %2471 = vmatpush1.msra.mxu0 %v1957
        %2472 = vmatprep.subr.mxu0 0.0
        %2473 = vmatpush1.msra.mxu0 %v1956
        %2474 = vmatprep.subr.mxu0 0.0
        %2475 = vmatpush1.msra.mxu0 %v1955
        %2476 = vmatprep.subr.mxu0 0.0
        %2477 = vmatpush2.msra.mxu0 0.0
        %2478 = vmatprep.subr.mxu0 0.0
        %2479 = vmatpush2.msra.mxu0 0.0
        %2480 = vmatprep.subr.mxu0 0.0
        %2481 = vmatpush2.msra.mxu0 0.0
        %2482 = vmatprep.subr.mxu0 0.0
        %2483 = vmatpush2.msra.mxu0 0.0
        %2484 = vmatprep.subr.mxu0 0.0
        %2485 = vmatpush2.msra.mxu0 0.0
        %2486 = vmatprep.subr.mxu0 0.0
        %2487 = vmatpush2.msra.mxu0 0.0
        %2488 = vmatprep.subr.mxu0 0.0
        %2489 = vmatpush2.msra.mxu0 0.0
        %2490 = vmatprep.subr.mxu0 0.0
        %2491 = vmatpush2.msra.mxu0 0.0
        %2492 = vmatprep.subr.mxu0 0.0
        %2493 = vmatpush2.msra.mxu0 0.0
        %2494 = vmatprep.subr.mxu0 0.0
        %2495 = vmatpush2.msra.mxu0 0.0
        %2496 = vmatprep.subr.mxu0 0.0
        %2497 = vmatpush2.msra.mxu0 0.0
        %2498 = vmatprep.subr.mxu0 0.0
        %2499 = vmatpush2.msra.mxu0 0.0
        %2500 = vmatprep.subr.mxu0 0.0
        %2501 = vmatpush2.msra.mxu0 0.0
        %2502 = vmatprep.subr.mxu0 0.0
        %2503 = vmatpush2.msra.mxu0 0.0
        %2504 = vmatprep.subr.mxu0 0.0
        %2505 = vmatpush2.msra.mxu0 0.0
        %2506 = vmatprep.subr.mxu0 0.0
        %2507 = vmatpush2.msra.mxu0 0.0
        %2508 = vmatprep.mubr.f32.mxu0 0.0
        %2509 = vmatmul.mubr.f32.gmra.mxu0 %v2349
        %v2510 = vpop.f32.mrf.mxu0
        %v2511 = vadd.f32 %v2190, %v2510
        %v2512 = vpop.f32.mrf.mxu0
        %2513 = vmatprep.mubr.f32.mxu0 0.0
        %2514 = vmatmul.mubr.f32.gmra.mxu0 %v2352
        %v2515 = vpop.f32.mrf.mxu0
        %v2516 = vadd.f32 %v2195, %v2515
        %v2517 = vpop.f32.mrf.mxu0
        %2518 = vmatprep.mubr.f32.mxu0 0.0
        %2519 = vmatmul.mubr.f32.gmra.mxu0 %v2355
        %v2520 = vpop.f32.mrf.mxu0
        %v2521 = vadd.f32 %v2200, %v2520
        %v2522 = vpop.f32.mrf.mxu0
        %2523 = vmatprep.mubr.f32.mxu0 0.0
        %2524 = vmatmul.mubr.f32.gmra.mxu0 %v2358
        %v2525 = vpop.f32.mrf.mxu0
        %v2526 = vadd.f32 %v2205, %v2525
        %v2527 = vpop.f32.mrf.mxu0
        %2528 = vmatprep.mubr.f32.mxu0 0.0
        %2529 = vmatmul.mubr.f32.gmra.mxu0 %v2361
        %v2530 = vpop.f32.mrf.mxu0
        %v2531 = vadd.f32 %v2210, %v2530
        %v2532 = vpop.f32.mrf.mxu0
        %2533 = vmatprep.mubr.f32.mxu0 0.0
        %2534 = vmatmul.mubr.f32.gmra.mxu0 %v2364
        %v2535 = vpop.f32.mrf.mxu0
        %v2536 = vadd.f32 %v2215, %v2535
        %v2537 = vpop.f32.mrf.mxu0
        %2538 = vmatprep.mubr.f32.mxu0 0.0
        %2539 = vmatmul.mubr.f32.gmra.mxu0 %v2367
        %v2540 = vpop.f32.mrf.mxu0
        %v2541 = vadd.f32 %v2220, %v2540
        %v2542 = vpop.f32.mrf.mxu0
        %2543 = vmatprep.mubr.f32.mxu0 0.0
        %2544 = vmatmul.mubr.f32.gmra.mxu0 %v2370
        %v2545 = vpop.f32.mrf.mxu0
        %v2546 = vadd.f32 %v2225, %v2545
        %v2547 = vpop.f32.mrf.mxu0
        %2548 = vmatprep.mubr.f32.mxu0 0.0
        %2549 = vmatmul.mubr.f32.gmra.mxu0 %v2373
        %v2550 = vpop.f32.mrf.mxu0
        %v2551 = vadd.f32 %v2230, %v2550
        %v2552 = vpop.f32.mrf.mxu0
        %2553 = vmatprep.mubr.f32.mxu0 0.0
        %2554 = vmatmul.mubr.f32.gmra.mxu0 %v2376
        %v2555 = vpop.f32.mrf.mxu0
        %v2556 = vadd.f32 %v2235, %v2555
        %v2557 = vpop.f32.mrf.mxu0
        %2558 = vmatprep.mubr.f32.mxu0 0.0
        %2559 = vmatmul.mubr.f32.gmra.mxu0 %v2379
        %v2560 = vpop.f32.mrf.mxu0
        %v2561 = vadd.f32 %v2240, %v2560
        %v2562 = vpop.f32.mrf.mxu0
        %2563 = vmatprep.mubr.f32.mxu0 0.0
        %2564 = vmatmul.mubr.f32.gmra.mxu0 %v2382
        %v2565 = vpop.f32.mrf.mxu0
        %v2566 = vadd.f32 %v2245, %v2565
        %v2567 = vpop.f32.mrf.mxu0
        %2568 = vmatprep.mubr.f32.mxu0 0.0
        %2569 = vmatmul.mubr.f32.gmra.mxu0 %v2385
        %v2570 = vpop.f32.mrf.mxu0
        %v2571 = vadd.f32 %v2250, %v2570
        %v2572 = vpop.f32.mrf.mxu0
        %2573 = vmatprep.mubr.f32.mxu0 0.0
        %2574 = vmatmul.mubr.f32.gmra.mxu0 %v2388
        %v2575 = vpop.f32.mrf.mxu0
        %v2576 = vadd.f32 %v2255, %v2575
        %v2577 = vpop.f32.mrf.mxu0
        %2578 = vmatprep.mubr.f32.mxu0 0.0
        %2579 = vmatmul.mubr.f32.gmra.mxu0 %v2391
        %v2580 = vpop.f32.mrf.mxu0
        %v2581 = vadd.f32 %v2260, %v2580
        %v2582 = vpop.f32.mrf.mxu0
        %2583 = vmatprep.mubr.f32.mxu0 0.0
        %2584 = vmatmul.mubr.f32.gmra.mxu0 %v2394
        %v2585 = vpop.f32.mrf.mxu0
        %v2586 = vadd.f32 %v2265, %v2585
        %v2587 = vpop.f32.mrf.mxu0
        %2588 = vmatprep.mubr.f32.mxu0 0.0
        %2589 = vmatmul.mubr.f32.gmra.mxu0 %v2397
        %v2590 = vpop.f32.mrf.mxu0
        %v2591 = vadd.f32 %v2270, %v2590
        %v2592 = vpop.f32.mrf.mxu0
        %2593 = vmatprep.mubr.f32.mxu0 0.0
        %2594 = vmatmul.mubr.f32.gmra.mxu0 %v2400
        %v2595 = vpop.f32.mrf.mxu0
        %v2596 = vadd.f32 %v2275, %v2595
        %v2597 = vpop.f32.mrf.mxu0
        %2598 = vmatprep.mubr.f32.mxu0 0.0
        %2599 = vmatmul.mubr.f32.gmra.mxu0 %v2403
        %v2600 = vpop.f32.mrf.mxu0
        %v2601 = vadd.f32 %v2280, %v2600
        %v2602 = vpop.f32.mrf.mxu0
        %2603 = vmatprep.mubr.f32.mxu0 0.0
        %2604 = vmatmul.mubr.f32.gmra.mxu0 %v2406
        %v2605 = vpop.f32.mrf.mxu0
        %v2606 = vadd.f32 %v2285, %v2605
        %v2607 = vpop.f32.mrf.mxu0
        %2608 = vmatprep.mubr.f32.mxu0 0.0
        %2609 = vmatmul.mubr.f32.gmra.mxu0 %v2409
        %v2610 = vpop.f32.mrf.mxu0
        %v2611 = vadd.f32 %v2290, %v2610
        %v2612 = vpop.f32.mrf.mxu0
        %2613 = vmatprep.mubr.f32.mxu0 0.0
        %2614 = vmatmul.mubr.f32.gmra.mxu0 %v2412
        %v2615 = vpop.f32.mrf.mxu0
        %v2616 = vadd.f32 %v2295, %v2615
        %v2617 = vpop.f32.mrf.mxu0
        %2618 = vmatprep.mubr.f32.mxu0 0.0
        %2619 = vmatmul.mubr.f32.gmra.mxu0 %v2415
        %v2620 = vpop.f32.mrf.mxu0
        %v2621 = vadd.f32 %v2300, %v2620
        %v2622 = vpop.f32.mrf.mxu0
        %2623 = vmatprep.mubr.f32.mxu0 0.0
        %2624 = vmatmul.mubr.f32.gmra.mxu0 %v2418
        %v2625 = vpop.f32.mrf.mxu0
        %v2626 = vadd.f32 %v2305, %v2625
        %v2627 = vpop.f32.mrf.mxu0
        %2628 = vmatprep.mubr.f32.mxu0 0.0
        %2629 = vmatmul.mubr.f32.gmra.mxu0 %v2421
        %v2630 = vpop.f32.mrf.mxu0
        %v2631 = vadd.f32 %v2310, %v2630
        %v2632 = vpop.f32.mrf.mxu0
        %2633 = vmatprep.mubr.f32.mxu0 0.0
        %2634 = vmatmul.mubr.f32.gmra.mxu0 %v2424
        %v2635 = vpop.f32.mrf.mxu0
        %v2636 = vadd.f32 %v2315, %v2635
        %v2637 = vpop.f32.mrf.mxu0
        %2638 = vmatprep.mubr.f32.mxu0 0.0
        %2639 = vmatmul.mubr.f32.gmra.mxu0 %v2427
        %v2640 = vpop.f32.mrf.mxu0
        %v2641 = vadd.f32 %v2320, %v2640
        %v2642 = vpop.f32.mrf.mxu0
        %2643 = vmatprep.mubr.f32.mxu0 0.0
        %2644 = vmatmul.mubr.f32.gmra.mxu0 %v2430
        %v2645 = vpop.f32.mrf.mxu0
        %v2646 = vadd.f32 %v2325, %v2645
        %v2647 = vpop.f32.mrf.mxu0
        %2648 = vmatprep.mubr.f32.mxu0 0.0
        %2649 = vmatmul.mubr.f32.gmra.mxu0 %v2433
        %v2650 = vpop.f32.mrf.mxu0
        %v2651 = vadd.f32 %v2330, %v2650
        %v2652 = vpop.f32.mrf.mxu0
        %2653 = vmatprep.mubr.f32.mxu0 0.0
        %2654 = vmatmul.mubr.f32.gmra.mxu0 %v2436
        %v2655 = vpop.f32.mrf.mxu0
        %v2656 = vadd.f32 %v2335, %v2655
        %v2657 = vpop.f32.mrf.mxu0
        %2658 = vmatprep.mubr.f32.mxu0 0.0
        %2659 = vmatmul.mubr.f32.gmra.mxu0 %v2439
        %v2660 = vpop.f32.mrf.mxu0
        %v2661 = vadd.f32 %v2340, %v2660
        %v2662 = vpop.f32.mrf.mxu0
        %2663 = vmatprep.mubr.f32.mxu0 0.0
        %2664 = vmatmul.mubr.f32.gmra.mxu0 %v2442
        %v2665 = vpop.f32.mrf.mxu0
        %v2666 = vadd.f32 %v2345, %v2665
        %v2667 = vpop.f32.mrf.mxu0
        %2668 = vdwg.mxu0
        %v2669 = vld [vmem:[%s8] sm:$0x1]
        %v2671 = vlaneseq
        %v2672 = vshrl.u32 %v2671, 7
        %v2673 = vsub.s32 0, %v2672
        %v2674 = vrot.slane %v2669, %v2673
        %v2676 = vadd.f32 %v2511, %v2674
        %v2677 = vadd.f32 %v2516, %v2674
        %v2678 = vadd.f32 %v2521, %v2674
        %v2679 = vadd.f32 %v2526, %v2674
        %v2680 = vadd.f32 %v2531, %v2674
        %v2681 = vadd.f32 %v2536, %v2674
        %v2682 = vadd.f32 %v2541, %v2674
        %v2683 = vadd.f32 %v2546, %v2674
        %v2684 = vadd.f32 %v2551, %v2674
        %v2685 = vadd.f32 %v2556, %v2674
        %v2686 = vadd.f32 %v2561, %v2674
        %v2687 = vadd.f32 %v2566, %v2674
        %v2688 = vadd.f32 %v2571, %v2674
        %v2689 = vadd.f32 %v2576, %v2674
        %v2690 = vadd.f32 %v2581, %v2674
        %v2691 = vadd.f32 %v2586, %v2674
        %v2692 = vadd.f32 %v2591, %v2674
        %v2693 = vadd.f32 %v2596, %v2674
        %v2694 = vadd.f32 %v2601, %v2674
        %v2695 = vadd.f32 %v2606, %v2674
        %v2696 = vadd.f32 %v2611, %v2674
        %v2697 = vadd.f32 %v2616, %v2674
        %v2698 = vadd.f32 %v2621, %v2674
        %v2699 = vadd.f32 %v2626, %v2674
        %v2700 = vadd.f32 %v2631, %v2674
        %v2701 = vadd.f32 %v2636, %v2674
        %v2702 = vadd.f32 %v2641, %v2674
        %v2703 = vadd.f32 %v2646, %v2674
        %v2704 = vadd.f32 %v2651, %v2674
        %v2705 = vadd.f32 %v2656, %v2674
        %v2706 = vadd.f32 %v2661, %v2674
        %v2707 = vadd.f32 %v2666, %v2674
        %v2708 = vmax.f32 %v2676, 0.0
        %v2709 = vmax.f32 %v2677, 0.0
        %v2710 = vmax.f32 %v2678, 0.0
        %v2711 = vmax.f32 %v2679, 0.0
        %v2712 = vmax.f32 %v2680, 0.0
        %v2713 = vmax.f32 %v2681, 0.0
        %v2714 = vmax.f32 %v2682, 0.0
        %v2715 = vmax.f32 %v2683, 0.0
        %v2716 = vmax.f32 %v2684, 0.0
        %v2717 = vmax.f32 %v2685, 0.0
        %v2718 = vmax.f32 %v2686, 0.0
        %v2719 = vmax.f32 %v2687, 0.0
        %v2720 = vmax.f32 %v2688, 0.0
        %v2721 = vmax.f32 %v2689, 0.0
        %v2722 = vmax.f32 %v2690, 0.0
        %v2723 = vmax.f32 %v2691, 0.0
        %v2724 = vmax.f32 %v2692, 0.0
        %v2725 = vmax.f32 %v2693, 0.0
        %v2726 = vmax.f32 %v2694, 0.0
        %v2727 = vmax.f32 %v2695, 0.0
        %v2728 = vmax.f32 %v2696, 0.0
        %v2729 = vmax.f32 %v2697, 0.0
        %v2730 = vmax.f32 %v2698, 0.0
        %v2731 = vmax.f32 %v2699, 0.0
        %v2732 = vmax.f32 %v2700, 0.0
        %v2733 = vmax.f32 %v2701, 0.0
        %v2734 = vmax.f32 %v2702, 0.0
        %v2735 = vmax.f32 %v2703, 0.0
        %v2736 = vmax.f32 %v2704, 0.0
        %v2737 = vmax.f32 %v2705, 0.0
        %v2738 = vmax.f32 %v2706, 0.0
        %v2739 = vmax.f32 %v2707, 0.0
        %2740 = vxpose.xlu0.b32.start [1/16] %v2708, 128
        %2741 = vxpose.xlu0.b32.cont [2/16] %v2709, 128
        %2742 = vxpose.xlu0.b32.cont [3/16] %v2710, 128
        %2743 = vxpose.xlu0.b32.cont [4/16] %v2711, 128
        %2744 = vxpose.xlu0.b32.cont [5/16] %v2712, 128
        %2745 = vxpose.xlu0.b32.cont [6/16] %v2713, 128
        %2746 = vxpose.xlu0.b32.cont [7/16] %v2714, 128
        %2747 = vxpose.xlu0.b32.cont [8/16] %v2715, 128
        %2748 = vxpose.xlu0.b32.cont [9/16] %v2716, 128
        %2749 = vxpose.xlu0.b32.cont [10/16] %v2717, 128
        %2750 = vxpose.xlu0.b32.cont [11/16] %v2718, 128
        %2751 = vxpose.xlu0.b32.cont [12/16] %v2719, 128
        %2752 = vxpose.xlu0.b32.cont [13/16] %v2720, 128
        %2753 = vxpose.xlu0.b32.cont [14/16] %v2721, 128
        %2754 = vxpose.xlu0.b32.cont [15/16] %v2722, 128
        %2755 = vxpose.xlu0.b32.end [16/16] %v2723, 128
        %v2756 = vpop.trf.xlu0
        %v2757 = vpop.trf.xlu0
        %v2758 = vpop.trf.xlu0
        %v2759 = vpop.trf.xlu0
        %v2760 = vpop.trf.xlu0
        %v2761 = vpop.trf.xlu0
        %v2762 = vpop.trf.xlu0
        %v2763 = vpop.trf.xlu0
        %v2764 = vpop.trf.xlu0
        %v2765 = vpop.trf.xlu0
        %v2766 = vpop.trf.xlu0
        %v2767 = vpop.trf.xlu0
        %v2768 = vpop.trf.xlu0
        %v2769 = vpop.trf.xlu0
        %v2770 = vpop.trf.xlu0
        %v2771 = vpop.trf.xlu0
        %2772 = vxpose.xlu0.b32.start [1/16] %v2724, 128
        %2773 = vxpose.xlu0.b32.cont [2/16] %v2725, 128
        %2774 = vxpose.xlu0.b32.cont [3/16] %v2726, 128
        %2775 = vxpose.xlu0.b32.cont [4/16] %v2727, 128
        %2776 = vxpose.xlu0.b32.cont [5/16] %v2728, 128
        %2777 = vxpose.xlu0.b32.cont [6/16] %v2729, 128
        %2778 = vxpose.xlu0.b32.cont [7/16] %v2730, 128
        %2779 = vxpose.xlu0.b32.cont [8/16] %v2731, 128
        %2780 = vxpose.xlu0.b32.cont [9/16] %v2732, 128
        %2781 = vxpose.xlu0.b32.cont [10/16] %v2733, 128
        %2782 = vxpose.xlu0.b32.cont [11/16] %v2734, 128
        %2783 = vxpose.xlu0.b32.cont [12/16] %v2735, 128
        %2784 = vxpose.xlu0.b32.cont [13/16] %v2736, 128
        %2785 = vxpose.xlu0.b32.cont [14/16] %v2737, 128
        %2786 = vxpose.xlu0.b32.cont [15/16] %v2738, 128
        %2787 = vxpose.xlu0.b32.end [16/16] %v2739, 128
        %v2788 = vpop.trf.xlu0
        %v2789 = vpop.trf.xlu0
        %v2790 = vpop.trf.xlu0
        %v2791 = vpop.trf.xlu0
        %v2792 = vpop.trf.xlu0
        %v2793 = vpop.trf.xlu0
        %v2794 = vpop.trf.xlu0
        %v2795 = vpop.trf.xlu0
        %v2796 = vpop.trf.xlu0
        %v2797 = vpop.trf.xlu0
        %v2798 = vpop.trf.xlu0
        %v2799 = vpop.trf.xlu0
        %v2800 = vpop.trf.xlu0
        %v2801 = vpop.trf.xlu0
        %v2802 = vpop.trf.xlu0
        %v2803 = vpop.trf.xlu0
        %2804 = vst [vmem:[%s340] sm:$0xff] %v2756
        %2805 = vst [vmem:[%s340 + $0x8] sm:$0xff] %v2788
        %2806 = vst [vmem:[%s340 + $0x10] sm:$0xff] %v2757
        %2807 = vst [vmem:[%s340 + $0x18] sm:$0xff] %v2789
        %2808 = vst [vmem:[%s340 + $0x20] sm:$0xff] %v2758
        %2809 = vst [vmem:[%s340 + $0x28] sm:$0xff] %v2790
        %2810 = vst [vmem:[%s340 + $0x30] sm:$0xff] %v2759
        %2811 = vst [vmem:[%s340 + $0x38] sm:$0xff] %v2791
        %s2812 = sand.u32 %s230, 1
        %s2813 = scalar_lea.sflag [#allocation3], %s2812
        %s2814 = sand.u32 %s230, 1
        %s2815 = smul.addr %s2814, 64
        %s2816 = scalar_lea.vmem [#allocation2], %s2815
        // Predicated region
        $region57: #{tpu_custom_call.1} parent=55 // pred_check
          %p2817 = pneg %p240
        $region58: #{tpu_custom_call.1} parent=55 // pred_check_branch
          %2819 = sbr.rel (%p2817) target = $region60
        $region59: #{tpu_custom_call.1} parent=55 // pred_region
          %s2821 = ssub.s32 1024, 1024
          %2822 = vsyncadd %s2813, %s2821
          %s2823 = smul.addr %s23, 8
          %s2824 = smul.addr %s2823, 128
          %s2825 = scalar_lea.hbm %s9, %s2824
          %s2826 = sshll.u32 %s2816, 4
          %s2827 = int_to_ptr.vmem [resolvable:$true] %s2826
          %2832 = dma.vmem_to_hbm [thread:$0]  %s2827, 1024, %s2825, %s2813, 256, 256, 16
        $region60: #{tpu_custom_call.1} parent=55 // pred_fallthru
          _
      $region56: #{tpu_custom_call.1} parent=5 // pred_fallthru
        _
      %p2833 = scmp.le.s32.totalorder 2, %s18
      // Predicated region
      $region61: #{tpu_custom_call.1} parent=5 // pred_check
        %p2834 = pneg %p2833
      $region62: #{tpu_custom_call.1} parent=5 // pred_check_branch
        %2836 = sbr.rel (%p2834) target = $region64
      $region63: #{tpu_custom_call.1} parent=5 // pred_region
        %s2837 = ssub.s32 %s18, 2
        // Predicated region
        $region65: #{tpu_custom_call.1} parent=63 // pred_check
          %p2838 = pneg %p246
        $region66: #{tpu_custom_call.1} parent=63 // pred_check_branch
          %2840 = sbr.rel (%p2838) target = $region68
        $region67: #{tpu_custom_call.1} parent=63 // pred_region
          %s2841 = sand.u32 %s231, 1
          %s2842 = scalar_lea.sflag [#allocation3], %s2841
          %s2843 = sand.u32 %s231, 1
          %s2844 = smul.addr %s2843, 64
          %s2845 = scalar_lea.vmem [#allocation2], %s2844
          %2846 = dma.done %s2842, 1024
        $region68: #{tpu_custom_call.1} parent=63 // pred_fallthru
          _
      $region64: #{tpu_custom_call.1} parent=5 // pred_fallthru
        _
    $region6: #{tpu_custom_call.1} parent=1 // loop_footer
      %s22 = sadd.s32 1, %s18
    $region7: #{tpu_custom_call.1} parent=1 // loop_footer_branch
      %17 = sbr.rel target = $region3
    $region8: #{tpu_custom_call.1} parent=1 // loop_exit
      _
    %2847 = vsyncpa [#allocation3], 1
    %s2848 = scalar_lea.sflag [#allocation3], 1
    %2849 = vsyncpa %s2848, 1

</llo_original>
